<compile_context>
chip_gen: v7x
topology: tpu7x:2x2x1
jax: 0.10.0
libtpu: 0.0.40
codegen_flags: <defaults>
</compile_context>

<pallas_src>
import functools
import numpy as np
import jax
import jax.numpy as jnp
from jax import lax
from jax.experimental import pallas as pl
from jax.experimental.pallas import tpu as pltpu


def _round_up(n, m):
    return ((n + m - 1) // m) * m


def _encode_and_decode(x, asp, wcat_ref, bcat_ref, decw_ref, decb_ref, out_ref,
                       *, kernel_sizes, seq_len, emb_dim, emb_pad):
    """Shared tail: gated window-means -> fused (conv+pool) matmul -> ReLU -> decoder.

    x   : (TB, L, E) f32 gathered input embeddings (NOT yet gated)
    asp : (TB, E)    f32 aspect embeddings (the multiplicative gate)
    """
    L, E, E_pad = seq_len, emb_dim, emb_pad
    TB = x.shape[0]
    max_k = max(kernel_sizes)

    # One reduction over L; every shifted window sum is derived from `total`
    # minus short prefix/suffix corrections (<= max_k - 1 row adds each).
    # NOTE: for very long L this subtraction can lose precision; windows could
    # then be accumulated in chunks instead.
    total = jnp.sum(x, axis=1)                              # (TB, E)
    prefixes = [jnp.zeros_like(total)]                      # sum of first j rows
    for j in range(1, max_k):
        prefixes.append(prefixes[j - 1] + x[:, j - 1, :])
    suffixes = [jnp.zeros_like(total)]                      # sum of last m rows
    for m in range(1, max_k):
        suffixes.append(suffixes[m - 1] + x[:, L - m, :])

    # The aspect gate is broadcast over L, so it commutes with the sum over t:
    # gate only the few partial sums instead of the whole (TB, L, E) tensor.
    g_total = total * asp
    g_pre = [p * asp for p in prefixes]
    g_suf = [s * asp for s in suffixes]

    # Window means for every (branch, tap).  Each tap is padded to its own
    # 128-lane-aligned block so the concatenate is pure vreg placement (no
    # cross-lane shifts when E % 128 != 0).
    pad = E_pad - E
    zpad = jnp.zeros((TB, pad), jnp.float32) if pad else None
    pieces = []
    for k in kernel_sizes:
        inv = 1.0 / float(L - k + 1)                        # folds to a constant
        for j in range(k):
            pieces.append((g_total - g_pre[j] - g_suf[k - 1 - j]) * inv)
            if pad:
                pieces.append(zpad)
    x_cat = jnp.concatenate(pieces, axis=1)                 # (TB, K_tot * E_pad)

    # One big MXU matmul replaces the sum(k_i) tiny per-tap dots.
    # TODO(synk): bf16 MXU operands with f32 accumulation for extra headroom.
    enc = jnp.dot(x_cat, wcat_ref[...], preferred_element_type=jnp.float32)
    enc = jnp.maximum(enc + bcat_ref[...], 0.0)             # ReLU(pool(conv(x)))

    # TODO(synk): nn.Dropout(0.5) is identity in eval mode (not implemented for training).
    logits = jnp.dot(enc, decw_ref[...], preferred_element_type=jnp.float32)
    out_ref[...] = (logits + decb_ref[...]).astype(out_ref.dtype)   # lane-dense (TB, 128)


def _kernel_fused_gather(ids_ref, emb_ref, wcat_ref, bcat_ref, decw_ref,
                         decb_ref, out_ref, *, kernel_sizes, seq_len, seq_pad,
                         emb_dim, emb_pad, vocab_pad, tile_b):
    """Embedding gather fused in-kernel via an exact one-hot MXU matmul."""
    TB, L, Lp, E, V = tile_b, seq_len, seq_pad, emb_dim, vocab_pad
    ids = ids_ref[...]                                        # (TB*Lp, 1) int32
    iota = lax.broadcasted_iota(jnp.int32, (TB * Lp, V), 1)
    onehot = (ids == iota).astype(jnp.float32)                # exact 0/1 rows
    rows = jnp.dot(onehot, emb_ref[...],
                   preferred_element_type=jnp.float32)        # (TB*Lp, E)
    rows = rows.reshape(TB, Lp, E)                            # Lp % 8 == 0 -> cheap
    x = rows[:, :L, :]                                        # input token embeddings
    asp = rows[:, L, :]                                       # aspect token embedding
    _encode_and_decode(x, asp, wcat_ref, bcat_ref, decw_ref, decb_ref, out_ref,
                       kernel_sizes=kernel_sizes, seq_len=L, emb_dim=E,
                       emb_pad=emb_pad)


def _kernel_pregathered(inp_ref, asp_ref, wcat_ref, bcat_ref, decw_ref,
                        decb_ref, out_ref, *, kernel_sizes, seq_len, emb_dim,
                        emb_pad):
    """Fallback: embeddings gathered by XLA, streamed (optionally in bf16)."""
    x = inp_ref[...].astype(jnp.float32)      # upcast right after the VMEM load
    asp = asp_ref[...].astype(jnp.float32)    # (v5e VPU/EUP have no bf16 ops)
    _encode_and_decode(x, asp, wcat_ref, bcat_ref, decw_ref, decb_ref, out_ref,
                       kernel_sizes=kernel_sizes, seq_len=seq_len,
                       emb_dim=emb_dim, emb_pad=emb_pad)


def textcnn_v3_forward(input_ids, aspect_token_id, params, kernel_sizes,
                       num_channels, *, activation_dtype=jnp.float32):
    emb = jnp.asarray(params["embedding"], jnp.float32)
    vocab, E = emb.shape
    B, L = input_ids.shape
    kernel_sizes = tuple(int(k) for k in kernel_sizes)
    num_channels = tuple(int(c) for c in num_channels)
    assert L >= max(kernel_sizes)
    K_tot = sum(kernel_sizes)
    sum_c = sum(num_channels)
    C_pad = _round_up(sum_c, 128)              # lane-dense encoder width
    OUT_PAD = 128                              # lane-dense logits (real: 3)
    E_pad = _round_up(E, 128)                  # 128-aligned per-tap lane block

    # ---- host-side parameter packing (block-diagonal, tap-major conv weights) ----
    w_cat_np = np.zeros((K_tot * E_pad, C_pad), np.float32)
    b_cat_np = np.zeros((1, C_pad), np.float32)
    tap, col = 0, 0
    for i, (k, c) in enumerate(zip(kernel_sizes, num_channels)):
        w = np.asarray(params["conv_w"][i], np.float32)       # (c, E, k) torch layout
        for j in range(k):
            w_cat_np[tap * E_pad:tap * E_pad + E, col:col + c] = w[:, :, j].T
            tap += 1
        b_cat_np[0, col:col + c] = np.asarray(params["conv_b"][i], np.float32)
        col += c
    dec_w_np = np.zeros((C_pad, OUT_PAD), np.float32)
    dec_w_np[:sum_c, :3] = np.asarray(params["dec_w"], np.float32).T
    dec_b_np = np.zeros((1, OUT_PAD), np.float32)
    dec_b_np[0, :3] = np.asarray(params["dec_b"], np.float32)
    w_cat, b_cat = jnp.asarray(w_cat_np), jnp.asarray(b_cat_np)
    dec_w, dec_b = jnp.asarray(dec_w_np), jnp.asarray(dec_b_np)
    weight_bytes = 4 * (w_cat.size + b_cat.size + dec_w.size + dec_b.size)

    # ---- hardware-aware VMEM budget (v5e/v6e: 128 MiB, v7x: 64 MiB per TC) ----
    try:
        vmem_cap = int(pltpu.get_tpu_info().vmem_capacity_bytes)
    except Exception:
        vmem_cap = 64 << 20                    # conservative (v7x per-TC VMEM)
    budget = int(0.35 * vmem_cap)              # per-grid-step block-bytes budget

    Lp = _round_up(L + 1, 8)                   # input tokens + aspect token, 8-aligned
    V_pad = _round_up(vocab, 8)
    act_itemsize = jnp.dtype(activation_dtype).itemsize

    def _blk_bytes_fused(tb):
        io = tb * Lp * 4 + tb * OUT_PAD * 4 + V_pad * E * 4
        tmp = tb * Lp * (V_pad + E) * 4 + tb * (K_tot * E_pad + C_pad) * 4
        return 2 * (io + weight_bytes) + tmp

    def _blk_bytes_pre(tb):
        io = tb * (L * E + E) * act_itemsize + tb * OUT_PAD * 4
        tmp = tb * L * E * 4 + tb * (K_tot * E_pad + C_pad) * 4
        return 2 * (io + weight_bytes) + tmp

    # Fuse the embedding gather in-kernel when the vocab is small enough that
    # the one-hot stays cheap; this removes the (B, L, E) HBM round trip that
    # an XLA-side gather would otherwise materialize.
    fuse_gather = (vocab <= 2048
                   and V_pad * E * 4 <= budget // 4
                   and _blk_bytes_fused(64) <= budget)
    blk_bytes = _blk_bytes_fused if fuse_gather else _blk_bytes_pre

    use_bf16_stream = (not fuse_gather
                       and jnp.dtype(activation_dtype) == jnp.dtype(jnp.bfloat16))
    tb_mult = 16 if use_bf16_stream else 8
    TB = min(_round_up(B, tb_mult), 1024)      # large cap: amortize grid-step overhead
    while TB > tb_mult and blk_bytes(TB) > budget:
        TB -= tb_mult
    TB = max(tb_mult, TB)
    # v7x shards the "parallel" batch axis across its 2 TensorCores -> prefer
    # at least 2 grid steps whenever the batch allows it.
    if _round_up(B, TB) // TB < 2 and B > tb_mult:
        TB = max(tb_mult, _round_up((B + 1) // 2, tb_mult))
    B_pad = _round_up(B, TB)
    grid = (B_pad // TB,)

    vmem_limit = int(min(int(0.8 * vmem_cap), max(2 * blk_bytes(TB), 32 << 20)))

    weight_specs = [
        pl.BlockSpec((K_tot * E_pad, C_pad), lambda b: (0, 0)),   # packed conv W
        pl.BlockSpec((1, C_pad), lambda b: (0, 0)),               # packed conv b
        pl.BlockSpec((C_pad, OUT_PAD), lambda b: (0, 0)),         # padded decoder W
        pl.BlockSpec((1, OUT_PAD), lambda b: (0, 0)),             # padded decoder b
    ]

    if fuse_gather:
        ids_all = jnp.concatenate(
            [jnp.asarray(input_ids, jnp.int32),
             jnp.asarray(aspect_token_id, jnp.int32)[:, None]], axis=1)  # (B, L+1)
        ids_all = jnp.pad(ids_all, ((0, B_pad - B), (0, Lp - (L + 1))))
        ids_flat = ids_all.reshape(B_pad * Lp, 1)
        emb_tbl = jnp.pad(emb, ((0, V_pad - vocab), (0, 0)))
        kernel = functools.partial(
            _kernel_fused_gather, kernel_sizes=kernel_sizes, seq_len=L,
            seq_pad=Lp, emb_dim=E, emb_pad=E_pad, vocab_pad=V_pad, tile_b=TB)
        in_specs = [pl.BlockSpec((TB * Lp, 1), lambda b: (b, 0)),
                    pl.BlockSpec((V_pad, E), lambda b: (0, 0))] + weight_specs
        args = (ids_flat, emb_tbl, w_cat, b_cat, dec_w, dec_b)
        flops = (2 * B_pad * Lp * V_pad * E
                 + 2 * B_pad * K_tot * E_pad * C_pad
                 + 2 * B_pad * C_pad * OUT_PAD)
        bytes_accessed = (4 * (B_pad * Lp + V_pad * E + B_pad * OUT_PAD)
                          + weight_bytes)
    else:
        input_x = jnp.take(emb, jnp.asarray(input_ids, jnp.int32), axis=0)
        aspect_x = jnp.take(emb, jnp.asarray(aspect_token_id, jnp.int32), axis=0)
        input_x = input_x.astype(activation_dtype)
        aspect_x = aspect_x.astype(activation_dtype)
        if B_pad != B:
            input_x = jnp.pad(input_x, ((0, B_pad - B), (0, 0), (0, 0)))
            aspect_x = jnp.pad(aspect_x, ((0, B_pad - B), (0, 0)))
        kernel = functools.partial(
            _kernel_pregathered, kernel_sizes=kernel_sizes, seq_len=L,
            emb_dim=E, emb_pad=E_pad)
        in_specs = [pl.BlockSpec((TB, L, E), lambda b: (b, 0, 0)),
                    pl.BlockSpec((TB, E), lambda b: (b, 0))] + weight_specs
        args = (input_x, aspect_x, w_cat, b_cat, dec_w, dec_b)
        flops = (2 * B_pad * K_tot * E_pad * C_pad
                 + 2 * B_pad * C_pad * OUT_PAD)
        bytes_accessed = (act_itemsize * (B_pad * L * E + B_pad * E)
                          + 4 * B_pad * OUT_PAD + weight_bytes)

    out = pl.pallas_call(
        kernel,
        out_shape=jax.ShapeDtypeStruct((B_pad, OUT_PAD), jnp.float32),
        grid_spec=pltpu.PrefetchScalarGridSpec(
            num_scalar_prefetch=0,
            grid=grid,
            in_specs=in_specs,
            out_specs=pl.BlockSpec((TB, OUT_PAD), lambda b: (b, 0)),
        ),
        compiler_params=pltpu.CompilerParams(
            dimension_semantics=("parallel",),
            vmem_limit_bytes=vmem_limit,
        ),
        cost_estimate=pl.CostEstimate(flops=int(flops), transcendentals=0,
                                      bytes_accessed=int(bytes_accessed)),
    )(*args)

    return out[:B, :3]


def ref_forward(input_ids, aspect_token_id, params, kernel_sizes, num_channels):
    """Pure-JAX f32 reference matching the PyTorch forward (eval mode)."""
    emb = params["embedding"]
    x = emb[input_ids] * emb[aspect_token_id][:, None, :]     # (B, L, E)
    B, L, E = x.shape
    encs = []
    for i, (k, c) in enumerate(zip(kernel_sizes, num_channels)):
        w = params["conv_w"][i]                               # (c, E, k)
        b = params["conv_b"][i]                               # (c,)
        out_len = L - k + 1
        windows = jnp.stack([x[:, t:t + k, :] for t in range(out_len)], axis=1)
        conv = jnp.einsum("btke,oek->bto", windows, w) + b    # (B, out_len, c)
        pooled = conv.mean(axis=1)                            # AdaptiveAvgPool1d(1)
        encs.append(jnp.maximum(pooled, 0.0))                 # ReLU after pool
    enc = jnp.concatenate(encs, axis=1)
    return enc @ params["dec_w"].T + params["dec_b"]


if __name__ == "__main__":
    key = jax.random.PRNGKey(0)
    kernel_sizes = (3, 4, 5)
    num_channels = (8, 8, 16)

    def make_params(key, vocab, E):
        keys = jax.random.split(key, 10)
        embedding = jax.random.normal(keys[0], (vocab, E), jnp.float32) * 0.1
        conv_w, conv_b = [], []
        for i, (c, k) in enumerate(zip(num_channels, kernel_sizes)):
            conv_w.append(jax.random.normal(keys[1 + i], (c, E, k), jnp.float32) * 0.1)
            conv_b.append(jax.random.normal(keys[4 + i], (c,), jnp.float32) * 0.1)
        dec_w = jax.random.normal(keys[7], (3, sum(num_channels)), jnp.float32) * 0.1
        dec_b = jax.random.normal(keys[8], (3,), jnp.float32) * 0.1
        return dict(embedding=embedding, conv_w=conv_w, conv_b=conv_b,
                    dec_w=dec_w, dec_b=dec_b), keys[9]

    # --- test 1: small vocab -> fused in-kernel embedding gather, f32, tight tol ---
    vocab, E, L, B = 50, 32, 16, 4
    params, dkey = make_params(key, vocab, E)
    input_ids = jax.random.randint(dkey, (B, L), 0, vocab)
    aspect_token_id = jax.random.randint(jax.random.fold_in(key, 99), (B,), 0, vocab)
    out = textcnn_v3_forward(input_ids, aspect_token_id, params,
                             kernel_sizes, num_channels)
    out = jax.block_until_ready(out)
    ref = ref_forward(input_ids, aspect_token_id, params, kernel_sizes, num_channels)
    assert out.shape == (B, 3)
    np.testing.assert_allclose(np.asarray(out), np.asarray(ref),
                               atol=1e-4, rtol=1e-4)

    # --- test 2: larger vocab -> XLA-gather fallback with bf16 activation streaming
    #     (multi-step "parallel" grid, looser tolerance due to bf16 inputs) ---
    vocab2, E2, L2, B2 = 6000, 32, 24, 20
    key2 = jax.random.fold_in(key, 7)
    params2, dkey2 = make_params(key2, vocab2, E2)
    input_ids2 = jax.random.randint(dkey2, (B2, L2), 0, vocab2)
    aspect_token_id2 = jax.random.randint(jax.random.fold_in(key2, 99), (B2,), 0, vocab2)
    out2 = textcnn_v3_forward(input_ids2, aspect_token_id2, params2,
                              kernel_sizes, num_channels,
                              activation_dtype=jnp.bfloat16)
    out2 = jax.block_until_ready(out2)
    ref2 = ref_forward(input_ids2, aspect_token_id2, params2,
                       kernel_sizes, num_channels)
    np.testing.assert_allclose(np.asarray(out2), np.asarray(ref2),
                               atol=5e-3, rtol=5e-2)

    print("KERNEL_OK")
</pallas_src>

<mosaic_0001>
module attributes {stable_mosaic.version = 11 : i64} {
  func.func @_kernel_fused_gather(%arg0: i32, %arg1: memref<192x1xi32, #tpu.memory_space<vmem>>, %arg2: memref<56x32xf32, #tpu.memory_space<vmem>>, %arg3: memref<1536x128xf32, #tpu.memory_space<vmem>>, %arg4: memref<1x128xf32, #tpu.memory_space<vmem>>, %arg5: memref<128x128xf32, #tpu.memory_space<vmem>>, %arg6: memref<1x128xf32, #tpu.memory_space<vmem>>, %arg7: memref<8x128xf32, #tpu.memory_space<vmem>>) attributes {dimension_semantics = [#tpu.dimension_semantics<parallel>], iteration_bounds = array<i64: 1>, scalar_prefetch = 0 : i64, scratch_operands = 0 : i64, tpu.core_type = #tpu.core_type<tc>, window_params = [{transform_indices = @transform_0, window_bounds = array<i64: 192, 1>}, {pipeline_mode = #tpu.pipeline_mode<synchronous>, transform_indices = @transform_1, window_bounds = array<i64: 56, 32>}, {pipeline_mode = #tpu.pipeline_mode<synchronous>, transform_indices = @transform_2, window_bounds = array<i64: 1536, 128>}, {pipeline_mode = #tpu.pipeline_mode<synchronous>, transform_indices = @transform_3, window_bounds = array<i64: 1, 128>}, {pipeline_mode = #tpu.pipeline_mode<synchronous>, transform_indices = @transform_4, window_bounds = array<i64: 128, 128>}, {pipeline_mode = #tpu.pipeline_mode<synchronous>, transform_indices = @transform_5, window_bounds = array<i64: 1, 128>}, {transform_indices = @transform_6, window_bounds = array<i64: 8, 128>}]} {
    %c0 = arith.constant 0 : index
    %c0_0 = arith.constant 0 : index
    %0 = vector.load %arg1[%c0, %c0_0] : memref<192x1xi32, #tpu.memory_space<vmem>>, vector<192x1xi32>
    %1 = tpu.iota {dimensions = array<i32: 1>} : vector<192x56xi32>
    %2 = vector.broadcast %0 : vector<192x1xi32> to vector<192x56xi32>
    %3 = arith.cmpi eq, %2, %1 : vector<192x56xi32>
    %4 = arith.extui %3 : vector<192x56xi1> to vector<192x56xi32>
    %5 = arith.sitofp %4 : vector<192x56xi32> to vector<192x56xf32>
    %c0_1 = arith.constant 0 : index
    %c0_2 = arith.constant 0 : index
    %6 = vector.load %arg2[%c0_1, %c0_2] : memref<56x32xf32, #tpu.memory_space<vmem>>, vector<56x32xf32>
    %cst = arith.constant dense<0.000000e+00> : vector<192x32xf32>
    %7 = tpu.matmul %5, %6, %cst {dimension_numbers = #tpu.dot_dimension_numbers<[1], [0], [0], [1], [0, 0, 1, 1], [], []>} : vector<192x56xf32>, vector<56x32xf32>, vector<192x32xf32> -> vector<192x32xf32>
    %8 = vector.shape_cast %7 : vector<192x32xf32> to vector<8x24x32xf32>
    %9 = vector.extract_strided_slice %8 {offsets = [0, 0, 0], sizes = [8, 16, 32], strides = [1, 1, 1]} : vector<8x24x32xf32> to vector<8x16x32xf32>
    %10 = vector.extract_strided_slice %8 {offsets = [0, 16, 0], sizes = [8, 1, 32], strides = [1, 1, 1]} : vector<8x24x32xf32> to vector<8x1x32xf32>
    %11 = vector.shape_cast %10 : vector<8x1x32xf32> to vector<8x32xf32>
    %cst_3 = arith.constant dense<0.000000e+00> : vector<8x32xf32>
    %12 = vector.multi_reduction <add>, %9, %cst_3 [1] : vector<8x16x32xf32> to vector<8x32xf32>
    %cst_4 = arith.constant 0.000000e+00 : f32
    %13 = vector.broadcast %cst_4 : f32 to vector<8x32xf32>
    %14 = vector.extract_strided_slice %9 {offsets = [0, 0, 0], sizes = [8, 1, 32], strides = [1, 1, 1]} : vector<8x16x32xf32> to vector<8x1x32xf32>
    %15 = vector.shape_cast %14 : vector<8x1x32xf32> to vector<8x32xf32>
    %16 = arith.addf %13, %15 : vector<8x32xf32>
    %17 = vector.extract_strided_slice %9 {offsets = [0, 1, 0], sizes = [8, 1, 32], strides = [1, 1, 1]} : vector<8x16x32xf32> to vector<8x1x32xf32>
    %18 = vector.shape_cast %17 : vector<8x1x32xf32> to vector<8x32xf32>
    %19 = arith.addf %16, %18 : vector<8x32xf32>
    %20 = vector.extract_strided_slice %9 {offsets = [0, 2, 0], sizes = [8, 1, 32], strides = [1, 1, 1]} : vector<8x16x32xf32> to vector<8x1x32xf32>
    %21 = vector.shape_cast %20 : vector<8x1x32xf32> to vector<8x32xf32>
    %22 = arith.addf %19, %21 : vector<8x32xf32>
    %23 = vector.extract_strided_slice %9 {offsets = [0, 3, 0], sizes = [8, 1, 32], strides = [1, 1, 1]} : vector<8x16x32xf32> to vector<8x1x32xf32>
    %24 = vector.shape_cast %23 : vector<8x1x32xf32> to vector<8x32xf32>
    %25 = arith.addf %22, %24 : vector<8x32xf32>
    %cst_5 = arith.constant 0.000000e+00 : f32
    %26 = vector.broadcast %cst_5 : f32 to vector<8x32xf32>
    %27 = vector.extract_strided_slice %9 {offsets = [0, 15, 0], sizes = [8, 1, 32], strides = [1, 1, 1]} : vector<8x16x32xf32> to vector<8x1x32xf32>
    %28 = vector.shape_cast %27 : vector<8x1x32xf32> to vector<8x32xf32>
    %29 = arith.addf %26, %28 : vector<8x32xf32>
    %30 = vector.extract_strided_slice %9 {offsets = [0, 14, 0], sizes = [8, 1, 32], strides = [1, 1, 1]} : vector<8x16x32xf32> to vector<8x1x32xf32>
    %31 = vector.shape_cast %30 : vector<8x1x32xf32> to vector<8x32xf32>
    %32 = arith.addf %29, %31 : vector<8x32xf32>
    %33 = vector.extract_strided_slice %9 {offsets = [0, 13, 0], sizes = [8, 1, 32], strides = [1, 1, 1]} : vector<8x16x32xf32> to vector<8x1x32xf32>
    %34 = vector.shape_cast %33 : vector<8x1x32xf32> to vector<8x32xf32>
    %35 = arith.addf %32, %34 : vector<8x32xf32>
    %36 = vector.extract_strided_slice %9 {offsets = [0, 12, 0], sizes = [8, 1, 32], strides = [1, 1, 1]} : vector<8x16x32xf32> to vector<8x1x32xf32>
    %37 = vector.shape_cast %36 : vector<8x1x32xf32> to vector<8x32xf32>
    %38 = arith.addf %35, %37 : vector<8x32xf32>
    %39 = arith.mulf %12, %11 : vector<8x32xf32>
    %40 = arith.mulf %13, %11 : vector<8x32xf32>
    %41 = arith.mulf %16, %11 : vector<8x32xf32>
    %42 = arith.mulf %19, %11 : vector<8x32xf32>
    %43 = arith.mulf %22, %11 : vector<8x32xf32>
    %44 = arith.mulf %25, %11 : vector<8x32xf32>
    %45 = arith.mulf %26, %11 : vector<8x32xf32>
    %46 = arith.mulf %29, %11 : vector<8x32xf32>
    %47 = arith.mulf %32, %11 : vector<8x32xf32>
    %48 = arith.mulf %35, %11 : vector<8x32xf32>
    %49 = arith.mulf %38, %11 : vector<8x32xf32>
    %cst_6 = arith.constant 0.000000e+00 : f32
    %50 = vector.broadcast %cst_6 : f32 to vector<8x96xf32>
    %51 = arith.subf %39, %40 : vector<8x32xf32>
    %52 = arith.subf %51, %47 : vector<8x32xf32>
    %cst_7 = arith.constant 0.0714285746 : f32
    %53 = vector.broadcast %cst_7 : f32 to vector<8x32xf32>
    %54 = arith.mulf %52, %53 : vector<8x32xf32>
    %55 = arith.subf %39, %41 : vector<8x32xf32>
    %56 = arith.subf %55, %46 : vector<8x32xf32>
    %cst_8 = arith.constant 0.0714285746 : f32
    %57 = vector.broadcast %cst_8 : f32 to vector<8x32xf32>
    %58 = arith.mulf %56, %57 : vector<8x32xf32>
    %59 = arith.subf %39, %42 : vector<8x32xf32>
    %60 = arith.subf %59, %45 : vector<8x32xf32>
    %cst_9 = arith.constant 0.0714285746 : f32
    %61 = vector.broadcast %cst_9 : f32 to vector<8x32xf32>
    %62 = arith.mulf %60, %61 : vector<8x32xf32>
    %63 = arith.subf %39, %40 : vector<8x32xf32>
    %64 = arith.subf %63, %48 : vector<8x32xf32>
    %cst_10 = arith.constant 0.0769230798 : f32
    %65 = vector.broadcast %cst_10 : f32 to vector<8x32xf32>
    %66 = arith.mulf %64, %65 : vector<8x32xf32>
    %67 = arith.subf %39, %41 : vector<8x32xf32>
    %68 = arith.subf %67, %47 : vector<8x32xf32>
    %cst_11 = arith.constant 0.0769230798 : f32
    %69 = vector.broadcast %cst_11 : f32 to vector<8x32xf32>
    %70 = arith.mulf %68, %69 : vector<8x32xf32>
    %71 = arith.subf %39, %42 : vector<8x32xf32>
    %72 = arith.subf %71, %46 : vector<8x32xf32>
    %cst_12 = arith.constant 0.0769230798 : f32
    %73 = vector.broadcast %cst_12 : f32 to vector<8x32xf32>
    %74 = arith.mulf %72, %73 : vector<8x32xf32>
    %75 = arith.subf %39, %43 : vector<8x32xf32>
    %76 = arith.subf %75, %45 : vector<8x32xf32>
    %cst_13 = arith.constant 0.0769230798 : f32
    %77 = vector.broadcast %cst_13 : f32 to vector<8x32xf32>
    %78 = arith.mulf %76, %77 : vector<8x32xf32>
    %79 = arith.subf %39, %40 : vector<8x32xf32>
    %80 = arith.subf %79, %49 : vector<8x32xf32>
    %cst_14 = arith.constant 0.0833333358 : f32
    %81 = vector.broadcast %cst_14 : f32 to vector<8x32xf32>
    %82 = arith.mulf %80, %81 : vector<8x32xf32>
    %83 = arith.subf %39, %41 : vector<8x32xf32>
    %84 = arith.subf %83, %48 : vector<8x32xf32>
    %cst_15 = arith.constant 0.0833333358 : f32
    %85 = vector.broadcast %cst_15 : f32 to vector<8x32xf32>
    %86 = arith.mulf %84, %85 : vector<8x32xf32>
    %87 = arith.subf %39, %42 : vector<8x32xf32>
    %88 = arith.subf %87, %47 : vector<8x32xf32>
    %cst_16 = arith.constant 0.0833333358 : f32
    %89 = vector.broadcast %cst_16 : f32 to vector<8x32xf32>
    %90 = arith.mulf %88, %89 : vector<8x32xf32>
    %91 = arith.subf %39, %43 : vector<8x32xf32>
    %92 = arith.subf %91, %46 : vector<8x32xf32>
    %cst_17 = arith.constant 0.0833333358 : f32
    %93 = vector.broadcast %cst_17 : f32 to vector<8x32xf32>
    %94 = arith.mulf %92, %93 : vector<8x32xf32>
    %95 = arith.subf %39, %44 : vector<8x32xf32>
    %96 = arith.subf %95, %45 : vector<8x32xf32>
    %cst_18 = arith.constant 0.0833333358 : f32
    %97 = vector.broadcast %cst_18 : f32 to vector<8x32xf32>
    %98 = arith.mulf %96, %97 : vector<8x32xf32>
    %99 = tpu.concatenate %54, %50, %58, %50, %62, %50, %66, %50, %70, %50, %74, %50, %78, %50, %82, %50 in 1 : vector<8x32xf32>, vector<8x96xf32>, vector<8x32xf32>, vector<8x96xf32>, vector<8x32xf32>, vector<8x96xf32>, vector<8x32xf32>, vector<8x96xf32>, vector<8x32xf32>, vector<8x96xf32>, vector<8x32xf32>, vector<8x96xf32>, vector<8x32xf32>, vector<8x96xf32>, vector<8x32xf32>, vector<8x96xf32> -> vector<8x1024xf32>
    %100 = tpu.concatenate %86, %50, %90, %50, %94, %50, %98, %50 in 1 : vector<8x32xf32>, vector<8x96xf32>, vector<8x32xf32>, vector<8x96xf32>, vector<8x32xf32>, vector<8x96xf32>, vector<8x32xf32>, vector<8x96xf32> -> vector<8x512xf32>
    %101 = tpu.concatenate %99, %100 in 1 : vector<8x1024xf32>, vector<8x512xf32> -> vector<8x1536xf32>
    %c0_19 = arith.constant 0 : index
    %c0_20 = arith.constant 0 : index
    %102 = vector.load %arg3[%c0_19, %c0_20] : memref<1536x128xf32, #tpu.memory_space<vmem>>, vector<1536x128xf32>
    %cst_21 = arith.constant dense<0.000000e+00> : vector<8x128xf32>
    %103 = tpu.matmul %101, %102, %cst_21 {dimension_numbers = #tpu.dot_dimension_numbers<[1], [0], [0], [1], [0, 0, 1, 1], [], []>} : vector<8x1536xf32>, vector<1536x128xf32>, vector<8x128xf32> -> vector<8x128xf32>
    %c0_22 = arith.constant 0 : index
    %c0_23 = arith.constant 0 : index
    %104 = vector.load %arg4[%c0_22, %c0_23] : memref<1x128xf32, #tpu.memory_space<vmem>>, vector<1x128xf32>
    %105 = vector.broadcast %104 : vector<1x128xf32> to vector<8x128xf32>
    %106 = arith.addf %103, %105 : vector<8x128xf32>
    %cst_24 = arith.constant 0.000000e+00 : f32
    %107 = vector.broadcast %cst_24 : f32 to vector<8x128xf32>
    %108 = arith.maximumf %106, %107 : vector<8x128xf32>
    %c0_25 = arith.constant 0 : index
    %c0_26 = arith.constant 0 : index
    %109 = vector.load %arg5[%c0_25, %c0_26] : memref<128x128xf32, #tpu.memory_space<vmem>>, vector<128x128xf32>
    %cst_27 = arith.constant dense<0.000000e+00> : vector<8x128xf32>
    %110 = tpu.matmul %108, %109, %cst_27 {dimension_numbers = #tpu.dot_dimension_numbers<[1], [0], [0], [1], [0, 0, 1, 1], [], []>} : vector<8x128xf32>, vector<128x128xf32>, vector<8x128xf32> -> vector<8x128xf32>
    %c0_28 = arith.constant 0 : index
    %c0_29 = arith.constant 0 : index
    %111 = vector.load %arg6[%c0_28, %c0_29] : memref<1x128xf32, #tpu.memory_space<vmem>>, vector<1x128xf32>
    %112 = vector.broadcast %111 : vector<1x128xf32> to vector<8x128xf32>
    %113 = arith.addf %110, %112 : vector<8x128xf32>
    %c0_30 = arith.constant 0 : index
    %c0_31 = arith.constant 0 : index
    %114 = vector.load %arg7[%c0_30, %c0_31] : memref<8x128xf32, #tpu.memory_space<vmem>>, vector<8x128xf32>
    tpu.vector_store %arg7[%c0_30, %c0_31], %113 {strides = array<i32>} : memref<8x128xf32, #tpu.memory_space<vmem>>, vector<8x128xf32>,
    return
  }
  func.func @transform_0(%arg0: i32) -> (i32, i32) {
    %c0_i32 = arith.constant 0 : i32
    %c0_i32_0 = arith.constant 0 : i32
    return %arg0, %c0_i32 : i32, i32
  }
  func.func @transform_1(%arg0: i32) -> (i32, i32) {
    %c0_i32 = arith.constant 0 : i32
    %c0_i32_0 = arith.constant 0 : i32
    %c0_i32_1 = arith.constant 0 : i32
    return %c0_i32, %c0_i32_0 : i32, i32
  }
  func.func @transform_2(%arg0: i32) -> (i32, i32) {
    %c0_i32 = arith.constant 0 : i32
    %c0_i32_0 = arith.constant 0 : i32
    %c0_i32_1 = arith.constant 0 : i32
    return %c0_i32, %c0_i32_0 : i32, i32
  }
  func.func @transform_3(%arg0: i32) -> (i32, i32) {
    %c0_i32 = arith.constant 0 : i32
    %c0_i32_0 = arith.constant 0 : i32
    %c0_i32_1 = arith.constant 0 : i32
    return %c0_i32, %c0_i32_0 : i32, i32
  }
  func.func @transform_4(%arg0: i32) -> (i32, i32) {
    %c0_i32 = arith.constant 0 : i32
    %c0_i32_0 = arith.constant 0 : i32
    %c0_i32_1 = arith.constant 0 : i32
    return %c0_i32, %c0_i32_0 : i32, i32
  }
  func.func @transform_5(%arg0: i32) -> (i32, i32) {
    %c0_i32 = arith.constant 0 : i32
    %c0_i32_0 = arith.constant 0 : i32
    %c0_i32_1 = arith.constant 0 : i32
    return %c0_i32, %c0_i32_0 : i32, i32
  }
  func.func @transform_6(%arg0: i32) -> (i32, i32) {
    %c0_i32 = arith.constant 0 : i32
    %c0_i32_0 = arith.constant 0 : i32
    return %arg0, %c0_i32 : i32, i32
  }
}

</mosaic_0001>

<llo_original>
// kernel: tpu_custom_call.1
$region0: #{tpu_custom_call.1}
  #allocation0 [shape = 'u32[]', space=smem, size = 0x4, offset = 0x4, fixed_abs, tag = 'smem constant byte address 0x4 - core index']
  #allocation1 [shape = 'u32[144,128]{1,0:T(1,128)}', space=vmem, size = 0x12000, scoped, tag = 'internal scratch']
  %s0 = inlined_call_operand.vmem [shape: s32[192,1], index: 0, kind: input, shape index: {}]
  %s1 = inlined_call_operand.vmem [shape: f32[56,32], index: 1, kind: input, shape index: {}]
  %s2 = inlined_call_operand.hbm [shape: f32[1536,128], index: 2, kind: input, shape index: {}]
  %s3 = inlined_call_operand.vmem [shape: f32[1,128], index: 3, kind: input, shape index: {}]
  %s4 = inlined_call_operand.vmem [shape: f32[128,128], index: 4, kind: input, shape index: {}]
  %s5 = inlined_call_operand.vmem [shape: f32[1,128], index: 5, kind: input, shape index: {}]
  %s6 = inlined_call_operand.hbm [shape: f32[8,128], index: 6, kind: output, shape index: {}]
  %s7 = sld [smem:[#allocation0]]
  $region38: #{tpu_custom_call.1} parent=0
    _
  %s9 = ssub.s32 1, %s7
  %s10 = scalar_select 0, %s9, %s7
  $region1: #{tpu_custom_call.1} parent=0
    #allocation2 [shape = 'u8[786432]{0}', space=vmem, size = 0xc0000, scoped, tag = 'input window, operand 2, single buffered']
    #allocation3 [shape = 's32[1]{0}', space=sflag, size = 0x4, scoped, tag = 'scoped memory for tpu_custom_call.1']
    #allocation4 [shape = 's32[1]{0}', space=sflag, size = 0x4, scoped, tag = 'scoped memory for tpu_custom_call.1']
    #allocation5 [shape = 'u8[4096]{0}', space=vmem, size = 0x1000, scoped, tag = 'output window, operand 0, single buffered']
    %11 = vsyncpa [#allocation3], 0
    %12 = vsyncpa [#allocation4], 0
    // Predicated region
    $region2: #{tpu_custom_call.1} parent=1 // pred_check
      _
    $region3: #{tpu_custom_call.1} parent=1 // pred_check_branch
      %14 = sbr.rel (0) target = $region5
    $region4: #{tpu_custom_call.1} parent=1 // pred_region
      _
    $region5: #{tpu_custom_call.1} parent=1 // pred_fallthru
      _
    // Predicated region
    $region6: #{tpu_custom_call.1} parent=1 // pred_check
      _
    $region7: #{tpu_custom_call.1} parent=1 // pred_check_branch
      %16 = sbr.rel (0) target = $region9
    $region8: #{tpu_custom_call.1} parent=1 // pred_region
      _
    $region9: #{tpu_custom_call.1} parent=1 // pred_fallthru
      _
    // Predicated region
    $region10: #{tpu_custom_call.1} parent=1 // pred_check
      _
    $region11: #{tpu_custom_call.1} parent=1 // pred_check_branch
      %18 = sbr.rel (0) target = $region13
    $region12: #{tpu_custom_call.1} parent=1 // pred_region
      %s20 = ssub.s32 24576, 24576
      %21 = vsyncadd [#allocation3], %s20
      %s22 = sshll.u32 [#allocation2], 4
      %s23 = int_to_ptr.vmem [resolvable:$true] %s22
      %28 = dma.hbm_to_vmem [thread:$0]  %s2, 24576, %s23, [#allocation3], 128, 128, 8
    $region13: #{tpu_custom_call.1} parent=1 // pred_fallthru
      _
    // Predicated region
    $region14: #{tpu_custom_call.1} parent=1 // pred_check
      _
    $region15: #{tpu_custom_call.1} parent=1 // pred_check_branch
      %30 = sbr.rel (0) target = $region17
    $region16: #{tpu_custom_call.1} parent=1 // pred_region
      _
    $region17: #{tpu_custom_call.1} parent=1 // pred_fallthru
      _
    // Predicated region
    $region18: #{tpu_custom_call.1} parent=1 // pred_check
      _
    $region19: #{tpu_custom_call.1} parent=1 // pred_check_branch
      %32 = sbr.rel (0) target = $region21
    $region20: #{tpu_custom_call.1} parent=1 // pred_region
      _
    $region21: #{tpu_custom_call.1} parent=1 // pred_fallthru
      _
    // Predicated region
    $region22: #{tpu_custom_call.1} parent=1 // pred_check
      _
    $region23: #{tpu_custom_call.1} parent=1 // pred_check_branch
      %34 = sbr.rel (0) target = $region25
    $region24: #{tpu_custom_call.1} parent=1 // pred_region
      _
    $region25: #{tpu_custom_call.1} parent=1 // pred_fallthru
      _
    // Predicated region
    $region26: #{tpu_custom_call.1} parent=1 // pred_check
      _
    $region27: #{tpu_custom_call.1} parent=1 // pred_check_branch
      %36 = sbr.rel (0) target = $region29
    $region28: #{tpu_custom_call.1} parent=1 // pred_region
      %37 = dma.done [#allocation3], 24576
    $region29: #{tpu_custom_call.1} parent=1 // pred_fallthru
      _
    %v38 = vld [vmem:[%s0] sm:$0xff]
    %v39 = vld [vmem:[%s0 + $0x8] sm:$0xff]
    %v40 = vld [vmem:[%s0 + $0x10] sm:$0xff]
    %v41 = vld [vmem:[%s0 + $0x18] sm:$0xff]
    %v42 = vld [vmem:[%s0 + $0x20] sm:$0xff]
    %v43 = vld [vmem:[%s0 + $0x28] sm:$0xff]
    %v44 = vld [vmem:[%s0 + $0x30] sm:$0xff]
    %v45 = vld [vmem:[%s0 + $0x38] sm:$0xff]
    %v46 = vld [vmem:[%s0 + $0x40] sm:$0xff]
    %v47 = vld [vmem:[%s0 + $0x48] sm:$0xff]
    %v48 = vld [vmem:[%s0 + $0x50] sm:$0xff]
    %v49 = vld [vmem:[%s0 + $0x58] sm:$0xff]
    %v50 = vld [vmem:[%s0 + $0x60] sm:$0xff]
    %v51 = vld [vmem:[%s0 + $0x68] sm:$0xff]
    %v52 = vld [vmem:[%s0 + $0x70] sm:$0xff]
    %v53 = vld [vmem:[%s0 + $0x78] sm:$0xff]
    %v54 = vld [vmem:[%s0 + $0x80] sm:$0xff]
    %v55 = vld [vmem:[%s0 + $0x88] sm:$0xff]
    %v56 = vld [vmem:[%s0 + $0x90] sm:$0xff]
    %v57 = vld [vmem:[%s0 + $0x98] sm:$0xff]
    %v58 = vld [vmem:[%s0 + $0xa0] sm:$0xff]
    %v59 = vld [vmem:[%s0 + $0xa8] sm:$0xff]
    %v60 = vld [vmem:[%s0 + $0xb0] sm:$0xff]
    %v61 = vld [vmem:[%s0 + $0xb8] sm:$0xff]
    %v62 = vlaneseq
    %v63 = vand.u32 %v62, 127
    %64 = vset.pattern.permute.xlu0 0
    %65 = vperm.xlu0 %64, %v38
    %v66 = vpop.permute.xlu0 %65
    %67 = vset.pattern.permute.xlu0 0
    %68 = vperm.xlu0 %67, %v39
    %v69 = vpop.permute.xlu0 %68
    %70 = vset.pattern.permute.xlu0 0
    %71 = vperm.xlu0 %70, %v40
    %v72 = vpop.permute.xlu0 %71
    %73 = vset.pattern.permute.xlu0 0
    %74 = vperm.xlu0 %73, %v41
    %v75 = vpop.permute.xlu0 %74
    %76 = vset.pattern.permute.xlu0 0
    %77 = vperm.xlu0 %76, %v42
    %v78 = vpop.permute.xlu0 %77
    %79 = vset.pattern.permute.xlu0 0
    %80 = vperm.xlu0 %79, %v43
    %v81 = vpop.permute.xlu0 %80
    %82 = vset.pattern.permute.xlu0 0
    %83 = vperm.xlu0 %82, %v44
    %v84 = vpop.permute.xlu0 %83
    %85 = vset.pattern.permute.xlu0 0
    %86 = vperm.xlu0 %85, %v45
    %v87 = vpop.permute.xlu0 %86
    %88 = vset.pattern.permute.xlu0 0
    %89 = vperm.xlu0 %88, %v46
    %v90 = vpop.permute.xlu0 %89
    %91 = vset.pattern.permute.xlu0 0
    %92 = vperm.xlu0 %91, %v47
    %v93 = vpop.permute.xlu0 %92
    %94 = vset.pattern.permute.xlu0 0
    %95 = vperm.xlu0 %94, %v48
    %v96 = vpop.permute.xlu0 %95
    %97 = vset.pattern.permute.xlu0 0
    %98 = vperm.xlu0 %97, %v49
    %v99 = vpop.permute.xlu0 %98
    %100 = vset.pattern.permute.xlu0 0
    %101 = vperm.xlu0 %100, %v50
    %v102 = vpop.permute.xlu0 %101
    %103 = vset.pattern.permute.xlu0 0
    %104 = vperm.xlu0 %103, %v51
    %v105 = vpop.permute.xlu0 %104
    %106 = vset.pattern.permute.xlu0 0
    %107 = vperm.xlu0 %106, %v52
    %v108 = vpop.permute.xlu0 %107
    %109 = vset.pattern.permute.xlu0 0
    %110 = vperm.xlu0 %109, %v53
    %v111 = vpop.permute.xlu0 %110
    %112 = vset.pattern.permute.xlu0 0
    %113 = vperm.xlu0 %112, %v54
    %v114 = vpop.permute.xlu0 %113
    %115 = vset.pattern.permute.xlu0 0
    %116 = vperm.xlu0 %115, %v55
    %v117 = vpop.permute.xlu0 %116
    %118 = vset.pattern.permute.xlu0 0
    %119 = vperm.xlu0 %118, %v56
    %v120 = vpop.permute.xlu0 %119
    %121 = vset.pattern.permute.xlu0 0
    %122 = vperm.xlu0 %121, %v57
    %v123 = vpop.permute.xlu0 %122
    %124 = vset.pattern.permute.xlu0 0
    %125 = vperm.xlu0 %124, %v58
    %v126 = vpop.permute.xlu0 %125
    %127 = vset.pattern.permute.xlu0 0
    %128 = vperm.xlu0 %127, %v59
    %v129 = vpop.permute.xlu0 %128
    %130 = vset.pattern.permute.xlu0 0
    %131 = vperm.xlu0 %130, %v60
    %v132 = vpop.permute.xlu0 %131
    %133 = vset.pattern.permute.xlu0 0
    %134 = vperm.xlu0 %133, %v61
    %v135 = vpop.permute.xlu0 %134
    %vm136 = vcmp.eq.s32.totalorder %v66, %v63
    %vm137 = vcmp.eq.s32.totalorder %v69, %v63
    %vm138 = vcmp.eq.s32.totalorder %v72, %v63
    %vm139 = vcmp.eq.s32.totalorder %v75, %v63
    %vm140 = vcmp.eq.s32.totalorder %v78, %v63
    %vm141 = vcmp.eq.s32.totalorder %v81, %v63
    %vm142 = vcmp.eq.s32.totalorder %v84, %v63
    %vm143 = vcmp.eq.s32.totalorder %v87, %v63
    %vm144 = vcmp.eq.s32.totalorder %v90, %v63
    %vm145 = vcmp.eq.s32.totalorder %v93, %v63
    %vm146 = vcmp.eq.s32.totalorder %v96, %v63
    %vm147 = vcmp.eq.s32.totalorder %v99, %v63
    %vm148 = vcmp.eq.s32.totalorder %v102, %v63
    %vm149 = vcmp.eq.s32.totalorder %v105, %v63
    %vm150 = vcmp.eq.s32.totalorder %v108, %v63
    %vm151 = vcmp.eq.s32.totalorder %v111, %v63
    %vm152 = vcmp.eq.s32.totalorder %v114, %v63
    %vm153 = vcmp.eq.s32.totalorder %v117, %v63
    %vm154 = vcmp.eq.s32.totalorder %v120, %v63
    %vm155 = vcmp.eq.s32.totalorder %v123, %v63
    %vm156 = vcmp.eq.s32.totalorder %v126, %v63
    %vm157 = vcmp.eq.s32.totalorder %v129, %v63
    %vm158 = vcmp.eq.s32.totalorder %v132, %v63
    %vm159 = vcmp.eq.s32.totalorder %v135, %v63
    %v160 = vsel %vm136, 1, 0
    %v161 = vsel %vm137, 1, 0
    %v162 = vsel %vm138, 1, 0
    %v163 = vsel %vm139, 1, 0
    %v164 = vsel %vm140, 1, 0
    %v165 = vsel %vm141, 1, 0
    %v166 = vsel %vm142, 1, 0
    %v167 = vsel %vm143, 1, 0
    %v168 = vsel %vm144, 1, 0
    %v169 = vsel %vm145, 1, 0
    %v170 = vsel %vm146, 1, 0
    %v171 = vsel %vm147, 1, 0
    %v172 = vsel %vm148, 1, 0
    %v173 = vsel %vm149, 1, 0
    %v174 = vsel %vm150, 1, 0
    %v175 = vsel %vm151, 1, 0
    %v176 = vsel %vm152, 1, 0
    %v177 = vsel %vm153, 1, 0
    %v178 = vsel %vm154, 1, 0
    %v179 = vsel %vm155, 1, 0
    %v180 = vsel %vm156, 1, 0
    %v181 = vsel %vm157, 1, 0
    %v182 = vsel %vm158, 1, 0
    %v183 = vsel %vm159, 1, 0
    %v184 = vcvt.s32.f32 %v160
    %v185 = vcvt.s32.f32 %v161
    %v186 = vcvt.s32.f32 %v162
    %v187 = vcvt.s32.f32 %v163
    %v188 = vcvt.s32.f32 %v164
    %v189 = vcvt.s32.f32 %v165
    %v190 = vcvt.s32.f32 %v166
    %v191 = vcvt.s32.f32 %v167
    %v192 = vcvt.s32.f32 %v168
    %v193 = vcvt.s32.f32 %v169
    %v194 = vcvt.s32.f32 %v170
    %v195 = vcvt.s32.f32 %v171
    %v196 = vcvt.s32.f32 %v172
    %v197 = vcvt.s32.f32 %v173
    %v198 = vcvt.s32.f32 %v174
    %v199 = vcvt.s32.f32 %v175
    %v200 = vcvt.s32.f32 %v176
    %v201 = vcvt.s32.f32 %v177
    %v202 = vcvt.s32.f32 %v178
    %v203 = vcvt.s32.f32 %v179
    %v204 = vcvt.s32.f32 %v180
    %v205 = vcvt.s32.f32 %v181
    %v206 = vcvt.s32.f32 %v182
    %v207 = vcvt.s32.f32 %v183
    %v208 = vld [vmem:[%s1] sm:$0xff]
    %v209 = vld [vmem:[%s1 + $0x8] sm:$0xff]
    %v210 = vld [vmem:[%s1 + $0x10] sm:$0xff]
    %v211 = vld [vmem:[%s1 + $0x18] sm:$0xff]
    %v212 = vld [vmem:[%s1 + $0x20] sm:$0xff]
    %v213 = vld [vmem:[%s1 + $0x28] sm:$0xff]
    %v214 = vld [vmem:[%s1 + $0x30] sm:$0xff]
    %vm215 = vcmask 457728
    %v217 = vsel %vm215, %v184, 0
    %v220 = vsel %vm215, %v185, 0
    %v223 = vsel %vm215, %v186, 0
    %v226 = vsel %vm215, %v187, 0
    %v229 = vsel %vm215, %v188, 0
    %v232 = vsel %vm215, %v189, 0
    %v235 = vsel %vm215, %v190, 0
    %v238 = vsel %vm215, %v191, 0
    %v241 = vsel %vm215, %v192, 0
    %v244 = vsel %vm215, %v193, 0
    %v247 = vsel %vm215, %v194, 0
    %v250 = vsel %vm215, %v195, 0
    %v253 = vsel %vm215, %v196, 0
    %v256 = vsel %vm215, %v197, 0
    %v259 = vsel %vm215, %v198, 0
    %v262 = vsel %vm215, %v199, 0
    %v265 = vsel %vm215, %v200, 0
    %v268 = vsel %vm215, %v201, 0
    %v271 = vsel %vm215, %v202, 0
    %v274 = vsel %vm215, %v203, 0
    %v277 = vsel %vm215, %v204, 0
    %v280 = vsel %vm215, %v205, 0
    %v283 = vsel %vm215, %v206, 0
    %v286 = vsel %vm215, %v207, 0
    %288 = vmatprep.subr.mxu0 0.0
    %289 = vmatpush1.msra.mxu0 %v208
    %290 = vmatprep.subr.mxu0 0.0
    %291 = vmatpush1.msra.mxu0 %v209
    %292 = vmatprep.subr.mxu0 0.0
    %293 = vmatpush1.msra.mxu0 %v210
    %294 = vmatprep.subr.mxu0 0.0
    %295 = vmatpush1.msra.mxu0 %v211
    %296 = vmatprep.subr.mxu0 0.0
    %297 = vmatpush1.msra.mxu0 %v212
    %298 = vmatprep.subr.mxu0 0.0
    %299 = vmatpush1.msra.mxu0 %v213
    %300 = vmatprep.subr.mxu0 0.0
    %301 = vmatpush1.msra.mxu0 %v214
    %302 = vmatprep.subr.mxu0 0.0
    %303 = vmatpush1.msra.mxu0 0.0
    %304 = vmatprep.subr.mxu0 0.0
    %305 = vmatpush1.msra.mxu0 0.0
    %306 = vmatprep.subr.mxu0 0.0
    %307 = vmatpush1.msra.mxu0 0.0
    %308 = vmatprep.subr.mxu0 0.0
    %309 = vmatpush1.msra.mxu0 0.0
    %310 = vmatprep.subr.mxu0 0.0
    %311 = vmatpush1.msra.mxu0 0.0
    %312 = vmatprep.subr.mxu0 0.0
    %313 = vmatpush1.msra.mxu0 0.0
    %314 = vmatprep.subr.mxu0 0.0
    %315 = vmatpush1.msra.mxu0 0.0
    %316 = vmatprep.subr.mxu0 0.0
    %317 = vmatpush1.msra.mxu0 0.0
    %318 = vmatprep.subr.mxu0 0.0
    %319 = vmatpush1.msra.mxu0 0.0
    %320 = vmatprep.subr.mxu0 0.0
    %321 = vmatpush1.msra.mxu0 0.0
    %322 = vmatprep.subr.mxu0 0.0
    %323 = vmatpush1.msra.mxu0 0.0
    %324 = vmatprep.subr.mxu0 0.0
    %325 = vmatpush1.msra.mxu0 0.0
    %326 = vmatprep.subr.mxu0 0.0
    %327 = vmatpush1.msra.mxu0 0.0
    %328 = vmatprep.subr.mxu0 0.0
    %329 = vmatpush1.msra.mxu0 0.0
    %330 = vmatprep.subr.mxu0 0.0
    %331 = vmatpush1.msra.mxu0 0.0
    %332 = vmatprep.subr.mxu0 0.0
    %333 = vmatpush1.msra.mxu0 0.0
    %334 = vmatprep.subr.mxu0 0.0
    %335 = vmatpush1.msra.mxu0 0.0
    %336 = vmatprep.subr.mxu0 0.0
    %337 = vmatpush1.msra.mxu0 0.0
    %338 = vmatprep.subr.mxu0 0.0
    %339 = vmatpush1.msra.mxu0 0.0
    %340 = vmatprep.subr.mxu0 0.0
    %341 = vmatpush1.msra.mxu0 0.0
    %342 = vmatprep.subr.mxu0 0.0
    %343 = vmatpush1.msra.mxu0 0.0
    %344 = vmatprep.subr.mxu0 0.0
    %345 = vmatpush1.msra.mxu0 0.0
    %346 = vmatprep.subr.mxu0 0.0
    %347 = vmatpush1.msra.mxu0 0.0
    %348 = vmatprep.subr.mxu0 0.0
    %349 = vmatpush1.msra.mxu0 0.0
    %350 = vmatprep.subr.mxu0 0.0
    %351 = vmatpush1.msra.mxu0 0.0
    %352 = vmatprep.mubr.f32.mxu0 0.0
    %353 = vmatmul.mubr.f32.gmra.mrb[0].mxu0 %v217
    %v354 = vpop.f32.mrb[0].mxu0
    %v355 = vadd.f32 0.0, %v354
    %v356 = vpop.f32.mrb[0].mxu0
    %357 = vmatprep.mubr.f32.mxu0 0.0
    %358 = vmatmul.mubr.f32.gmra.mrb[0].mxu0 %v220
    %v359 = vpop.f32.mrb[0].mxu0
    %v360 = vadd.f32 0.0, %v359
    %v361 = vpop.f32.mrb[0].mxu0
    %362 = vmatprep.mubr.f32.mxu0 0.0
    %363 = vmatmul.mubr.f32.gmra.mrb[0].mxu0 %v223
    %v364 = vpop.f32.mrb[0].mxu0
    %v365 = vadd.f32 0.0, %v364
    %v366 = vpop.f32.mrb[0].mxu0
    %367 = vmatprep.mubr.f32.mxu0 0.0
    %368 = vmatmul.mubr.f32.gmra.mrb[0].mxu0 %v226
    %v369 = vpop.f32.mrb[0].mxu0
    %v370 = vadd.f32 0.0, %v369
    %v371 = vpop.f32.mrb[0].mxu0
    %372 = vmatprep.mubr.f32.mxu0 0.0
    %373 = vmatmul.mubr.f32.gmra.mrb[0].mxu0 %v229
    %v374 = vpop.f32.mrb[0].mxu0
    %v375 = vadd.f32 0.0, %v374
    %v376 = vpop.f32.mrb[0].mxu0
    %377 = vmatprep.mubr.f32.mxu0 0.0
    %378 = vmatmul.mubr.f32.gmra.mrb[0].mxu0 %v232
    %v379 = vpop.f32.mrb[0].mxu0
    %v380 = vadd.f32 0.0, %v379
    %v381 = vpop.f32.mrb[0].mxu0
    %382 = vmatprep.mubr.f32.mxu0 0.0
    %383 = vmatmul.mubr.f32.gmra.mrb[0].mxu0 %v235
    %v384 = vpop.f32.mrb[0].mxu0
    %v385 = vadd.f32 0.0, %v384
    %v386 = vpop.f32.mrb[0].mxu0
    %387 = vmatprep.mubr.f32.mxu0 0.0
    %388 = vmatmul.mubr.f32.gmra.mrb[0].mxu0 %v238
    %v389 = vpop.f32.mrb[0].mxu0
    %v390 = vadd.f32 0.0, %v389
    %v391 = vpop.f32.mrb[0].mxu0
    %392 = vmatprep.mubr.f32.mxu0 0.0
    %393 = vmatmul.mubr.f32.gmra.mrb[0].mxu0 %v241
    %v394 = vpop.f32.mrb[0].mxu0
    %v395 = vadd.f32 0.0, %v394
    %v396 = vpop.f32.mrb[0].mxu0
    %397 = vmatprep.mubr.f32.mxu0 0.0
    %398 = vmatmul.mubr.f32.gmra.mrb[0].mxu0 %v244
    %v399 = vpop.f32.mrb[0].mxu0
    %v400 = vadd.f32 0.0, %v399
    %v401 = vpop.f32.mrb[0].mxu0
    %402 = vmatprep.mubr.f32.mxu0 0.0
    %403 = vmatmul.mubr.f32.gmra.mrb[0].mxu0 %v247
    %v404 = vpop.f32.mrb[0].mxu0
    %v405 = vadd.f32 0.0, %v404
    %v406 = vpop.f32.mrb[0].mxu0
    %407 = vmatprep.mubr.f32.mxu0 0.0
    %408 = vmatmul.mubr.f32.gmra.mrb[0].mxu0 %v250
    %v409 = vpop.f32.mrb[0].mxu0
    %v410 = vadd.f32 0.0, %v409
    %v411 = vpop.f32.mrb[0].mxu0
    %412 = vmatprep.mubr.f32.mxu0 0.0
    %413 = vmatmul.mubr.f32.gmra.mrb[0].mxu0 %v253
    %v414 = vpop.f32.mrb[0].mxu0
    %v415 = vadd.f32 0.0, %v414
    %v416 = vpop.f32.mrb[0].mxu0
    %417 = vmatprep.mubr.f32.mxu0 0.0
    %418 = vmatmul.mubr.f32.gmra.mrb[0].mxu0 %v256
    %v419 = vpop.f32.mrb[0].mxu0
    %v420 = vadd.f32 0.0, %v419
    %v421 = vpop.f32.mrb[0].mxu0
    %422 = vmatprep.mubr.f32.mxu0 0.0
    %423 = vmatmul.mubr.f32.gmra.mrb[0].mxu0 %v259
    %v424 = vpop.f32.mrb[0].mxu0
    %v425 = vadd.f32 0.0, %v424
    %v426 = vpop.f32.mrb[0].mxu0
    %427 = vmatprep.mubr.f32.mxu0 0.0
    %428 = vmatmul.mubr.f32.gmra.mrb[0].mxu0 %v262
    %v429 = vpop.f32.mrb[0].mxu0
    %v430 = vadd.f32 0.0, %v429
    %v431 = vpop.f32.mrb[0].mxu0
    %432 = vmatprep.mubr.f32.mxu0 0.0
    %433 = vmatmul.mubr.f32.gmra.mrb[0].mxu0 %v265
    %v434 = vpop.f32.mrb[0].mxu0
    %v435 = vadd.f32 0.0, %v434
    %v436 = vpop.f32.mrb[0].mxu0
    %437 = vmatprep.mubr.f32.mxu0 0.0
    %438 = vmatmul.mubr.f32.gmra.mrb[0].mxu0 %v268
    %v439 = vpop.f32.mrb[0].mxu0
    %v440 = vadd.f32 0.0, %v439
    %v441 = vpop.f32.mrb[0].mxu0
    %442 = vmatprep.mubr.f32.mxu0 0.0
    %443 = vmatmul.mubr.f32.gmra.mrb[0].mxu0 %v271
    %v444 = vpop.f32.mrb[0].mxu0
    %v445 = vadd.f32 0.0, %v444
    %v446 = vpop.f32.mrb[0].mxu0
    %447 = vmatprep.mubr.f32.mxu0 0.0
    %448 = vmatmul.mubr.f32.gmra.mrb[0].mxu0 %v274
    %v449 = vpop.f32.mrb[0].mxu0
    %v450 = vadd.f32 0.0, %v449
    %v451 = vpop.f32.mrb[0].mxu0
    %452 = vmatprep.mubr.f32.mxu0 0.0
    %453 = vmatmul.mubr.f32.gmra.mrb[0].mxu0 %v277
    %v454 = vpop.f32.mrb[0].mxu0
    %v455 = vadd.f32 0.0, %v454
    %v456 = vpop.f32.mrb[0].mxu0
    %457 = vmatprep.mubr.f32.mxu0 0.0
    %458 = vmatmul.mubr.f32.gmra.mrb[0].mxu0 %v280
    %v459 = vpop.f32.mrb[0].mxu0
    %v460 = vadd.f32 0.0, %v459
    %v461 = vpop.f32.mrb[0].mxu0
    %462 = vmatprep.mubr.f32.mxu0 0.0
    %463 = vmatmul.mubr.f32.gmra.mrb[0].mxu0 %v283
    %v464 = vpop.f32.mrb[0].mxu0
    %v465 = vadd.f32 0.0, %v464
    %v466 = vpop.f32.mrb[0].mxu0
    %467 = vmatprep.mubr.f32.mxu0 0.0
    %468 = vmatmul.mubr.f32.gmra.mrb[0].mxu0 %v286
    %v469 = vpop.f32.mrb[0].mxu0
    %v470 = vadd.f32 0.0, %v469
    %v471 = vpop.f32.mrb[0].mxu0
    %472 = vdwg.mxu0
    %vm473 = vcmask 261120
    %v474 = vsel %vm473, %v355, 0.0
    %v475 = vsel %vm473, %v360, 0.0
    %v476 = vadd.f32 %v474, %v475
    %v477 = vrot.slane %v476, 4
    %v478 = vadd.f32 %v476, %v477
    %v479 = vrot.slane %v478, 2
    %v480 = vadd.f32 %v478, %v479
    %v481 = vrot.slane %v480, 1
    %v482 = vadd.f32 %v480, %v481
    %v483 = vsel %vm473, %v370, 0.0
    %v484 = vsel %vm473, %v375, 0.0
    %v485 = vadd.f32 %v483, %v484
    %v486 = vrot.slane %v485, 4
    %v487 = vadd.f32 %v485, %v486
    %v488 = vrot.slane %v487, 2
    %v489 = vadd.f32 %v487, %v488
    %v490 = vrot.slane %v489, 1
    %v491 = vadd.f32 %v489, %v490
    %v492 = vsel %vm473, %v385, 0.0
    %v493 = vsel %vm473, %v390, 0.0
    %v494 = vadd.f32 %v492, %v493
    %v495 = vrot.slane %v494, 4
    %v496 = vadd.f32 %v494, %v495
    %v497 = vrot.slane %v496, 2
    %v498 = vadd.f32 %v496, %v497
    %v499 = vrot.slane %v498, 1
    %v500 = vadd.f32 %v498, %v499
    %v501 = vsel %vm473, %v400, 0.0
    %v502 = vsel %vm473, %v405, 0.0
    %v503 = vadd.f32 %v501, %v502
    %v504 = vrot.slane %v503, 4
    %v505 = vadd.f32 %v503, %v504
    %v506 = vrot.slane %v505, 2
    %v507 = vadd.f32 %v505, %v506
    %v508 = vrot.slane %v507, 1
    %v509 = vadd.f32 %v507, %v508
    %v510 = vsel %vm473, %v415, 0.0
    %v511 = vsel %vm473, %v420, 0.0
    %v512 = vadd.f32 %v510, %v511
    %v513 = vrot.slane %v512, 4
    %v514 = vadd.f32 %v512, %v513
    %v515 = vrot.slane %v514, 2
    %v516 = vadd.f32 %v514, %v515
    %v517 = vrot.slane %v516, 1
    %v518 = vadd.f32 %v516, %v517
    %v519 = vsel %vm473, %v430, 0.0
    %v520 = vsel %vm473, %v435, 0.0
    %v521 = vadd.f32 %v519, %v520
    %v522 = vrot.slane %v521, 4
    %v523 = vadd.f32 %v521, %v522
    %v524 = vrot.slane %v523, 2
    %v525 = vadd.f32 %v523, %v524
    %v526 = vrot.slane %v525, 1
    %v527 = vadd.f32 %v525, %v526
    %v528 = vsel %vm473, %v445, 0.0
    %v529 = vsel %vm473, %v450, 0.0
    %v530 = vadd.f32 %v528, %v529
    %v531 = vrot.slane %v530, 4
    %v532 = vadd.f32 %v530, %v531
    %v533 = vrot.slane %v532, 2
    %v534 = vadd.f32 %v532, %v533
    %v535 = vrot.slane %v534, 1
    %v536 = vadd.f32 %v534, %v535
    %v537 = vsel %vm473, %v460, 0.0
    %v538 = vsel %vm473, %v465, 0.0
    %v539 = vadd.f32 %v537, %v538
    %v540 = vrot.slane %v539, 4
    %v541 = vadd.f32 %v539, %v540
    %v542 = vrot.slane %v541, 2
    %v543 = vadd.f32 %v541, %v542
    %v544 = vrot.slane %v543, 1
    %v545 = vadd.f32 %v543, %v544
    %v546 = vadd.f32 %v355, 0.0
    %v547 = vadd.f32 %v370, 0.0
    %v548 = vadd.f32 %v385, 0.0
    %v549 = vadd.f32 %v400, 0.0
    %v550 = vadd.f32 %v415, 0.0
    %v551 = vadd.f32 %v430, 0.0
    %v552 = vadd.f32 %v445, 0.0
    %v553 = vadd.f32 %v460, 0.0
    %v562 = vrot.slane %v355, 1
    %v563 = vrot.slane %v370, 1
    %v564 = vrot.slane %v385, 1
    %v565 = vrot.slane %v400, 1
    %v566 = vrot.slane %v415, 1
    %v567 = vrot.slane %v430, 1
    %v568 = vrot.slane %v445, 1
    %v569 = vrot.slane %v460, 1
    %v578 = vadd.f32 %v546, %v562
    %v579 = vadd.f32 %v547, %v563
    %v580 = vadd.f32 %v548, %v564
    %v581 = vadd.f32 %v549, %v565
    %v582 = vadd.f32 %v550, %v566
    %v583 = vadd.f32 %v551, %v567
    %v584 = vadd.f32 %v552, %v568
    %v585 = vadd.f32 %v553, %v569
    %v586 = vrot.slane %v355, 2
    %v587 = vrot.slane %v370, 2
    %v588 = vrot.slane %v385, 2
    %v589 = vrot.slane %v400, 2
    %v590 = vrot.slane %v415, 2
    %v591 = vrot.slane %v430, 2
    %v592 = vrot.slane %v445, 2
    %v593 = vrot.slane %v460, 2
    %v602 = vadd.f32 %v578, %v586
    %v603 = vadd.f32 %v579, %v587
    %v604 = vadd.f32 %v580, %v588
    %v605 = vadd.f32 %v581, %v589
    %v606 = vadd.f32 %v582, %v590
    %v607 = vadd.f32 %v583, %v591
    %v608 = vadd.f32 %v584, %v592
    %v609 = vadd.f32 %v585, %v593
    %v610 = vrot.slane %v355, 3
    %v611 = vrot.slane %v370, 3
    %v612 = vrot.slane %v385, 3
    %v613 = vrot.slane %v400, 3
    %v614 = vrot.slane %v415, 3
    %v615 = vrot.slane %v430, 3
    %v616 = vrot.slane %v445, 3
    %v617 = vrot.slane %v460, 3
    %v626 = vadd.f32 %v602, %v610
    %v627 = vadd.f32 %v603, %v611
    %v628 = vadd.f32 %v604, %v612
    %v629 = vadd.f32 %v605, %v613
    %v630 = vadd.f32 %v606, %v614
    %v631 = vadd.f32 %v607, %v615
    %v632 = vadd.f32 %v608, %v616
    %v633 = vadd.f32 %v609, %v617
    %v634 = vadd.f32 %v360, 0.0
    %v635 = vadd.f32 %v375, 0.0
    %v636 = vadd.f32 %v390, 0.0
    %v637 = vadd.f32 %v405, 0.0
    %v638 = vadd.f32 %v420, 0.0
    %v639 = vadd.f32 %v435, 0.0
    %v640 = vadd.f32 %v450, 0.0
    %v641 = vadd.f32 %v465, 0.0
    %v650 = vrot.slane %v360, 7
    %v651 = vrot.slane %v375, 7
    %v652 = vrot.slane %v390, 7
    %v653 = vrot.slane %v405, 7
    %v654 = vrot.slane %v420, 7
    %v655 = vrot.slane %v435, 7
    %v656 = vrot.slane %v450, 7
    %v657 = vrot.slane %v465, 7
    %v666 = vadd.f32 %v634, %v650
    %v667 = vadd.f32 %v635, %v651
    %v668 = vadd.f32 %v636, %v652
    %v669 = vadd.f32 %v637, %v653
    %v670 = vadd.f32 %v638, %v654
    %v671 = vadd.f32 %v639, %v655
    %v672 = vadd.f32 %v640, %v656
    %v673 = vadd.f32 %v641, %v657
    %v674 = vrot.slane %v360, 6
    %v675 = vrot.slane %v375, 6
    %v676 = vrot.slane %v390, 6
    %v677 = vrot.slane %v405, 6
    %v678 = vrot.slane %v420, 6
    %v679 = vrot.slane %v435, 6
    %v680 = vrot.slane %v450, 6
    %v681 = vrot.slane %v465, 6
    %v690 = vadd.f32 %v666, %v674
    %v691 = vadd.f32 %v667, %v675
    %v692 = vadd.f32 %v668, %v676
    %v693 = vadd.f32 %v669, %v677
    %v694 = vadd.f32 %v670, %v678
    %v695 = vadd.f32 %v671, %v679
    %v696 = vadd.f32 %v672, %v680
    %v697 = vadd.f32 %v673, %v681
    %v698 = vrot.slane %v360, 5
    %v699 = vrot.slane %v375, 5
    %v700 = vrot.slane %v390, 5
    %v701 = vrot.slane %v405, 5
    %v702 = vrot.slane %v420, 5
    %v703 = vrot.slane %v435, 5
    %v704 = vrot.slane %v450, 5
    %v705 = vrot.slane %v465, 5
    %v714 = vadd.f32 %v690, %v698
    %v715 = vadd.f32 %v691, %v699
    %v716 = vadd.f32 %v692, %v700
    %v717 = vadd.f32 %v693, %v701
    %v718 = vadd.f32 %v694, %v702
    %v719 = vadd.f32 %v695, %v703
    %v720 = vadd.f32 %v696, %v704
    %v721 = vadd.f32 %v697, %v705
    %v722 = vmul.f32 %v482, %v365
    %v723 = vmul.f32 %v491, %v380
    %v724 = vmul.f32 %v500, %v395
    %v725 = vmul.f32 %v509, %v410
    %v726 = vmul.f32 %v518, %v425
    %v727 = vmul.f32 %v527, %v440
    %v728 = vmul.f32 %v536, %v455
    %v729 = vmul.f32 %v545, %v470
    %v730 = vmul.f32 %v365, 0.0
    %v731 = vmul.f32 %v380, 0.0
    %v732 = vmul.f32 %v395, 0.0
    %v733 = vmul.f32 %v410, 0.0
    %v734 = vmul.f32 %v425, 0.0
    %v735 = vmul.f32 %v440, 0.0
    %v736 = vmul.f32 %v455, 0.0
    %v737 = vmul.f32 %v470, 0.0
    %v738 = vmul.f32 %v546, %v365
    %v739 = vmul.f32 %v547, %v380
    %v740 = vmul.f32 %v548, %v395
    %v741 = vmul.f32 %v549, %v410
    %v742 = vmul.f32 %v550, %v425
    %v743 = vmul.f32 %v551, %v440
    %v744 = vmul.f32 %v552, %v455
    %v745 = vmul.f32 %v553, %v470
    %v746 = vmul.f32 %v578, %v365
    %v747 = vmul.f32 %v579, %v380
    %v748 = vmul.f32 %v580, %v395
    %v749 = vmul.f32 %v581, %v410
    %v750 = vmul.f32 %v582, %v425
    %v751 = vmul.f32 %v583, %v440
    %v752 = vmul.f32 %v584, %v455
    %v753 = vmul.f32 %v585, %v470
    %v754 = vmul.f32 %v602, %v365
    %v755 = vmul.f32 %v603, %v380
    %v756 = vmul.f32 %v604, %v395
    %v757 = vmul.f32 %v605, %v410
    %v758 = vmul.f32 %v606, %v425
    %v759 = vmul.f32 %v607, %v440
    %v760 = vmul.f32 %v608, %v455
    %v761 = vmul.f32 %v609, %v470
    %v762 = vmul.f32 %v626, %v365
    %v763 = vmul.f32 %v627, %v380
    %v764 = vmul.f32 %v628, %v395
    %v765 = vmul.f32 %v629, %v410
    %v766 = vmul.f32 %v630, %v425
    %v767 = vmul.f32 %v631, %v440
    %v768 = vmul.f32 %v632, %v455
    %v769 = vmul.f32 %v633, %v470
    %v778 = vrot.slane %v365, 1
    %v779 = vrot.slane %v380, 1
    %v780 = vrot.slane %v395, 1
    %v781 = vrot.slane %v410, 1
    %v782 = vrot.slane %v425, 1
    %v783 = vrot.slane %v440, 1
    %v784 = vrot.slane %v455, 1
    %v785 = vrot.slane %v470, 1
    %v794 = vmul.f32 %v634, %v778
    %v795 = vmul.f32 %v635, %v779
    %v796 = vmul.f32 %v636, %v780
    %v797 = vmul.f32 %v637, %v781
    %v798 = vmul.f32 %v638, %v782
    %v799 = vmul.f32 %v639, %v783
    %v800 = vmul.f32 %v640, %v784
    %v801 = vmul.f32 %v641, %v785
    %v802 = vmul.f32 %v666, %v778
    %v803 = vmul.f32 %v667, %v779
    %v804 = vmul.f32 %v668, %v780
    %v805 = vmul.f32 %v669, %v781
    %v806 = vmul.f32 %v670, %v782
    %v807 = vmul.f32 %v671, %v783
    %v808 = vmul.f32 %v672, %v784
    %v809 = vmul.f32 %v673, %v785
    %v810 = vmul.f32 %v690, %v778
    %v811 = vmul.f32 %v691, %v779
    %v812 = vmul.f32 %v692, %v780
    %v813 = vmul.f32 %v693, %v781
    %v814 = vmul.f32 %v694, %v782
    %v815 = vmul.f32 %v695, %v783
    %v816 = vmul.f32 %v696, %v784
    %v817 = vmul.f32 %v697, %v785
    %v818 = vmul.f32 %v714, %v778
    %v819 = vmul.f32 %v715, %v779
    %v820 = vmul.f32 %v716, %v780
    %v821 = vmul.f32 %v717, %v781
    %v822 = vmul.f32 %v718, %v782
    %v823 = vmul.f32 %v719, %v783
    %v824 = vmul.f32 %v720, %v784
    %v825 = vmul.f32 %v721, %v785
    %v826 = vsub.f32 %v722, %v730
    %v827 = vsub.f32 %v723, %v731
    %v828 = vsub.f32 %v724, %v732
    %v829 = vsub.f32 %v725, %v733
    %v830 = vsub.f32 %v726, %v734
    %v831 = vsub.f32 %v727, %v735
    %v832 = vsub.f32 %v728, %v736
    %v833 = vsub.f32 %v729, %v737
    %v842 = vrot.slane %v802, 7
    %v843 = vrot.slane %v803, 7
    %v844 = vrot.slane %v804, 7
    %v845 = vrot.slane %v805, 7
    %v846 = vrot.slane %v806, 7
    %v847 = vrot.slane %v807, 7
    %v848 = vrot.slane %v808, 7
    %v849 = vrot.slane %v809, 7
    %v858 = vsub.f32 %v826, %v842
    %v859 = vsub.f32 %v827, %v843
    %v860 = vsub.f32 %v828, %v844
    %v861 = vsub.f32 %v829, %v845
    %v862 = vsub.f32 %v830, %v846
    %v863 = vsub.f32 %v831, %v847
    %v864 = vsub.f32 %v832, %v848
    %v865 = vsub.f32 %v833, %v849
    %v866 = vmul.f32 %v858, 0.071428575
    %v867 = vmul.f32 %v859, 0.071428575
    %v868 = vmul.f32 %v860, 0.071428575
    %v869 = vmul.f32 %v861, 0.071428575
    %v870 = vmul.f32 %v862, 0.071428575
    %v871 = vmul.f32 %v863, 0.071428575
    %v872 = vmul.f32 %v864, 0.071428575
    %v873 = vmul.f32 %v865, 0.071428575
    %v874 = vsub.f32 %v722, %v738
    %v875 = vsub.f32 %v723, %v739
    %v876 = vsub.f32 %v724, %v740
    %v877 = vsub.f32 %v725, %v741
    %v878 = vsub.f32 %v726, %v742
    %v879 = vsub.f32 %v727, %v743
    %v880 = vsub.f32 %v728, %v744
    %v881 = vsub.f32 %v729, %v745
    %v890 = vrot.slane %v794, 7
    %v891 = vrot.slane %v795, 7
    %v892 = vrot.slane %v796, 7
    %v893 = vrot.slane %v797, 7
    %v894 = vrot.slane %v798, 7
    %v895 = vrot.slane %v799, 7
    %v896 = vrot.slane %v800, 7
    %v897 = vrot.slane %v801, 7
    %v906 = vsub.f32 %v874, %v890
    %v907 = vsub.f32 %v875, %v891
    %v908 = vsub.f32 %v876, %v892
    %v909 = vsub.f32 %v877, %v893
    %v910 = vsub.f32 %v878, %v894
    %v911 = vsub.f32 %v879, %v895
    %v912 = vsub.f32 %v880, %v896
    %v913 = vsub.f32 %v881, %v897
    %v914 = vmul.f32 %v906, 0.071428575
    %v915 = vmul.f32 %v907, 0.071428575
    %v916 = vmul.f32 %v908, 0.071428575
    %v917 = vmul.f32 %v909, 0.071428575
    %v918 = vmul.f32 %v910, 0.071428575
    %v919 = vmul.f32 %v911, 0.071428575
    %v920 = vmul.f32 %v912, 0.071428575
    %v921 = vmul.f32 %v913, 0.071428575
    %v922 = vsub.f32 %v722, %v746
    %v923 = vsub.f32 %v723, %v747
    %v924 = vsub.f32 %v724, %v748
    %v925 = vsub.f32 %v725, %v749
    %v926 = vsub.f32 %v726, %v750
    %v927 = vsub.f32 %v727, %v751
    %v928 = vsub.f32 %v728, %v752
    %v929 = vsub.f32 %v729, %v753
    %v930 = vsub.f32 %v922, %v730
    %v931 = vsub.f32 %v923, %v731
    %v932 = vsub.f32 %v924, %v732
    %v933 = vsub.f32 %v925, %v733
    %v934 = vsub.f32 %v926, %v734
    %v935 = vsub.f32 %v927, %v735
    %v936 = vsub.f32 %v928, %v736
    %v937 = vsub.f32 %v929, %v737
    %v938 = vmul.f32 %v930, 0.071428575
    %v939 = vmul.f32 %v931, 0.071428575
    %v940 = vmul.f32 %v932, 0.071428575
    %v941 = vmul.f32 %v933, 0.071428575
    %v942 = vmul.f32 %v934, 0.071428575
    %v943 = vmul.f32 %v935, 0.071428575
    %v944 = vmul.f32 %v936, 0.071428575
    %v945 = vmul.f32 %v937, 0.071428575
    %v954 = vrot.slane %v810, 7
    %v955 = vrot.slane %v811, 7
    %v956 = vrot.slane %v812, 7
    %v957 = vrot.slane %v813, 7
    %v958 = vrot.slane %v814, 7
    %v959 = vrot.slane %v815, 7
    %v960 = vrot.slane %v816, 7
    %v961 = vrot.slane %v817, 7
    %v970 = vsub.f32 %v826, %v954
    %v971 = vsub.f32 %v827, %v955
    %v972 = vsub.f32 %v828, %v956
    %v973 = vsub.f32 %v829, %v957
    %v974 = vsub.f32 %v830, %v958
    %v975 = vsub.f32 %v831, %v959
    %v976 = vsub.f32 %v832, %v960
    %v977 = vsub.f32 %v833, %v961
    %v978 = vmul.f32 %v970, 0.07692308
    %v979 = vmul.f32 %v971, 0.07692308
    %v980 = vmul.f32 %v972, 0.07692308
    %v981 = vmul.f32 %v973, 0.07692308
    %v982 = vmul.f32 %v974, 0.07692308
    %v983 = vmul.f32 %v975, 0.07692308
    %v984 = vmul.f32 %v976, 0.07692308
    %v985 = vmul.f32 %v977, 0.07692308
    %v986 = vsub.f32 %v874, %v842
    %v987 = vsub.f32 %v875, %v843
    %v988 = vsub.f32 %v876, %v844
    %v989 = vsub.f32 %v877, %v845
    %v990 = vsub.f32 %v878, %v846
    %v991 = vsub.f32 %v879, %v847
    %v992 = vsub.f32 %v880, %v848
    %v993 = vsub.f32 %v881, %v849
    %v994 = vmul.f32 %v986, 0.07692308
    %v995 = vmul.f32 %v987, 0.07692308
    %v996 = vmul.f32 %v988, 0.07692308
    %v997 = vmul.f32 %v989, 0.07692308
    %v998 = vmul.f32 %v990, 0.07692308
    %v999 = vmul.f32 %v991, 0.07692308
    %v1000 = vmul.f32 %v992, 0.07692308
    %v1001 = vmul.f32 %v993, 0.07692308
    %v1002 = vsub.f32 %v922, %v890
    %v1003 = vsub.f32 %v923, %v891
    %v1004 = vsub.f32 %v924, %v892
    %v1005 = vsub.f32 %v925, %v893
    %v1006 = vsub.f32 %v926, %v894
    %v1007 = vsub.f32 %v927, %v895
    %v1008 = vsub.f32 %v928, %v896
    %v1009 = vsub.f32 %v929, %v897
    %v1010 = vmul.f32 %v1002, 0.07692308
    %v1011 = vmul.f32 %v1003, 0.07692308
    %v1012 = vmul.f32 %v1004, 0.07692308
    %v1013 = vmul.f32 %v1005, 0.07692308
    %v1014 = vmul.f32 %v1006, 0.07692308
    %v1015 = vmul.f32 %v1007, 0.07692308
    %v1016 = vmul.f32 %v1008, 0.07692308
    %v1017 = vmul.f32 %v1009, 0.07692308
    %v1018 = vsub.f32 %v722, %v754
    %v1019 = vsub.f32 %v723, %v755
    %v1020 = vsub.f32 %v724, %v756
    %v1021 = vsub.f32 %v725, %v757
    %v1022 = vsub.f32 %v726, %v758
    %v1023 = vsub.f32 %v727, %v759
    %v1024 = vsub.f32 %v728, %v760
    %v1025 = vsub.f32 %v729, %v761
    %v1026 = vsub.f32 %v1018, %v730
    %v1027 = vsub.f32 %v1019, %v731
    %v1028 = vsub.f32 %v1020, %v732
    %v1029 = vsub.f32 %v1021, %v733
    %v1030 = vsub.f32 %v1022, %v734
    %v1031 = vsub.f32 %v1023, %v735
    %v1032 = vsub.f32 %v1024, %v736
    %v1033 = vsub.f32 %v1025, %v737
    %v1034 = vmul.f32 %v1026, 0.07692308
    %v1035 = vmul.f32 %v1027, 0.07692308
    %v1036 = vmul.f32 %v1028, 0.07692308
    %v1037 = vmul.f32 %v1029, 0.07692308
    %v1038 = vmul.f32 %v1030, 0.07692308
    %v1039 = vmul.f32 %v1031, 0.07692308
    %v1040 = vmul.f32 %v1032, 0.07692308
    %v1041 = vmul.f32 %v1033, 0.07692308
    %v1050 = vrot.slane %v818, 7
    %v1051 = vrot.slane %v819, 7
    %v1052 = vrot.slane %v820, 7
    %v1053 = vrot.slane %v821, 7
    %v1054 = vrot.slane %v822, 7
    %v1055 = vrot.slane %v823, 7
    %v1056 = vrot.slane %v824, 7
    %v1057 = vrot.slane %v825, 7
    %v1066 = vsub.f32 %v826, %v1050
    %v1067 = vsub.f32 %v827, %v1051
    %v1068 = vsub.f32 %v828, %v1052
    %v1069 = vsub.f32 %v829, %v1053
    %v1070 = vsub.f32 %v830, %v1054
    %v1071 = vsub.f32 %v831, %v1055
    %v1072 = vsub.f32 %v832, %v1056
    %v1073 = vsub.f32 %v833, %v1057
    %v1074 = vmul.f32 %v1066, 0.083333336
    %v1075 = vmul.f32 %v1067, 0.083333336
    %v1076 = vmul.f32 %v1068, 0.083333336
    %v1077 = vmul.f32 %v1069, 0.083333336
    %v1078 = vmul.f32 %v1070, 0.083333336
    %v1079 = vmul.f32 %v1071, 0.083333336
    %v1080 = vmul.f32 %v1072, 0.083333336
    %v1081 = vmul.f32 %v1073, 0.083333336
    %v1082 = vsub.f32 %v874, %v954
    %v1083 = vsub.f32 %v875, %v955
    %v1084 = vsub.f32 %v876, %v956
    %v1085 = vsub.f32 %v877, %v957
    %v1086 = vsub.f32 %v878, %v958
    %v1087 = vsub.f32 %v879, %v959
    %v1088 = vsub.f32 %v880, %v960
    %v1089 = vsub.f32 %v881, %v961
    %v1090 = vmul.f32 %v1082, 0.083333336
    %v1091 = vmul.f32 %v1083, 0.083333336
    %v1092 = vmul.f32 %v1084, 0.083333336
    %v1093 = vmul.f32 %v1085, 0.083333336
    %v1094 = vmul.f32 %v1086, 0.083333336
    %v1095 = vmul.f32 %v1087, 0.083333336
    %v1096 = vmul.f32 %v1088, 0.083333336
    %v1097 = vmul.f32 %v1089, 0.083333336
    %v1098 = vsub.f32 %v922, %v842
    %v1099 = vsub.f32 %v923, %v843
    %v1100 = vsub.f32 %v924, %v844
    %v1101 = vsub.f32 %v925, %v845
    %v1102 = vsub.f32 %v926, %v846
    %v1103 = vsub.f32 %v927, %v847
    %v1104 = vsub.f32 %v928, %v848
    %v1105 = vsub.f32 %v929, %v849
    %v1106 = vmul.f32 %v1098, 0.083333336
    %v1107 = vmul.f32 %v1099, 0.083333336
    %v1108 = vmul.f32 %v1100, 0.083333336
    %v1109 = vmul.f32 %v1101, 0.083333336
    %v1110 = vmul.f32 %v1102, 0.083333336
    %v1111 = vmul.f32 %v1103, 0.083333336
    %v1112 = vmul.f32 %v1104, 0.083333336
    %v1113 = vmul.f32 %v1105, 0.083333336
    %v1114 = vsub.f32 %v1018, %v890
    %v1115 = vsub.f32 %v1019, %v891
    %v1116 = vsub.f32 %v1020, %v892
    %v1117 = vsub.f32 %v1021, %v893
    %v1118 = vsub.f32 %v1022, %v894
    %v1119 = vsub.f32 %v1023, %v895
    %v1120 = vsub.f32 %v1024, %v896
    %v1121 = vsub.f32 %v1025, %v897
    %v1122 = vmul.f32 %v1114, 0.083333336
    %v1123 = vmul.f32 %v1115, 0.083333336
    %v1124 = vmul.f32 %v1116, 0.083333336
    %v1125 = vmul.f32 %v1117, 0.083333336
    %v1126 = vmul.f32 %v1118, 0.083333336
    %v1127 = vmul.f32 %v1119, 0.083333336
    %v1128 = vmul.f32 %v1120, 0.083333336
    %v1129 = vmul.f32 %v1121, 0.083333336
    %v1130 = vsub.f32 %v722, %v762
    %v1131 = vsub.f32 %v723, %v763
    %v1132 = vsub.f32 %v724, %v764
    %v1133 = vsub.f32 %v725, %v765
    %v1134 = vsub.f32 %v726, %v766
    %v1135 = vsub.f32 %v727, %v767
    %v1136 = vsub.f32 %v728, %v768
    %v1137 = vsub.f32 %v729, %v769
    %v1138 = vsub.f32 %v1130, %v730
    %v1139 = vsub.f32 %v1131, %v731
    %v1140 = vsub.f32 %v1132, %v732
    %v1141 = vsub.f32 %v1133, %v733
    %v1142 = vsub.f32 %v1134, %v734
    %v1143 = vsub.f32 %v1135, %v735
    %v1144 = vsub.f32 %v1136, %v736
    %v1145 = vsub.f32 %v1137, %v737
    %v1146 = vmul.f32 %v1138, 0.083333336
    %v1147 = vmul.f32 %v1139, 0.083333336
    %v1148 = vmul.f32 %v1140, 0.083333336
    %v1149 = vmul.f32 %v1141, 0.083333336
    %v1150 = vmul.f32 %v1142, 0.083333336
    %v1151 = vmul.f32 %v1143, 0.083333336
    %v1152 = vmul.f32 %v1144, 0.083333336
    %v1153 = vmul.f32 %v1145, 0.083333336
    %v1162 = vrot.slane %v867, 7
    %vm1163 = vcmask 1041409
    %v1164 = vsel %vm1163, %v1162, %v866
    %v1165 = vrot.slane %v868, 6
    %vm1166 = vcmask 1042434
    %v1167 = vsel %vm1166, %v1165, %v1164
    %v1168 = vrot.slane %v869, 5
    %vm1169 = vcmask 1043459
    %v1170 = vsel %vm1169, %v1168, %v1167
    %v1171 = vrot.slane %v870, 4
    %vm1172 = vcmask 1044484
    %v1173 = vsel %vm1172, %v1171, %v1170
    %v1174 = vrot.slane %v871, 3
    %vm1175 = vcmask 1045509
    %v1176 = vsel %vm1175, %v1174, %v1173
    %v1177 = vrot.slane %v872, 2
    %vm1178 = vcmask 1046534
    %v1179 = vsel %vm1178, %v1177, %v1176
    %v1180 = vrot.slane %v873, 1
    %vm1181 = vcmask 1047559
    %v1182 = vsel %vm1181, %v1180, %v1179
    %v1192 = vrot.slane %v915, 7
    %v1193 = vsel %vm1163, %v1192, %v914
    %v1194 = vrot.slane %v916, 6
    %v1195 = vsel %vm1166, %v1194, %v1193
    %v1196 = vrot.slane %v917, 5
    %v1197 = vsel %vm1169, %v1196, %v1195
    %v1198 = vrot.slane %v918, 4
    %v1199 = vsel %vm1172, %v1198, %v1197
    %v1200 = vrot.slane %v919, 3
    %v1201 = vsel %vm1175, %v1200, %v1199
    %v1202 = vrot.slane %v920, 2
    %v1203 = vsel %vm1178, %v1202, %v1201
    %v1204 = vrot.slane %v921, 1
    %v1205 = vsel %vm1181, %v1204, %v1203
    %v1215 = vrot.slane %v939, 7
    %v1216 = vsel %vm1163, %v1215, %v938
    %v1217 = vrot.slane %v940, 6
    %v1218 = vsel %vm1166, %v1217, %v1216
    %v1219 = vrot.slane %v941, 5
    %v1220 = vsel %vm1169, %v1219, %v1218
    %v1221 = vrot.slane %v942, 4
    %v1222 = vsel %vm1172, %v1221, %v1220
    %v1223 = vrot.slane %v943, 3
    %v1224 = vsel %vm1175, %v1223, %v1222
    %v1225 = vrot.slane %v944, 2
    %v1226 = vsel %vm1178, %v1225, %v1224
    %v1227 = vrot.slane %v945, 1
    %v1228 = vsel %vm1181, %v1227, %v1226
    %v1238 = vrot.slane %v979, 7
    %v1239 = vsel %vm1163, %v1238, %v978
    %v1240 = vrot.slane %v980, 6
    %v1241 = vsel %vm1166, %v1240, %v1239
    %v1242 = vrot.slane %v981, 5
    %v1243 = vsel %vm1169, %v1242, %v1241
    %v1244 = vrot.slane %v982, 4
    %v1245 = vsel %vm1172, %v1244, %v1243
    %v1246 = vrot.slane %v983, 3
    %v1247 = vsel %vm1175, %v1246, %v1245
    %v1248 = vrot.slane %v984, 2
    %v1249 = vsel %vm1178, %v1248, %v1247
    %v1250 = vrot.slane %v985, 1
    %v1251 = vsel %vm1181, %v1250, %v1249
    %v1261 = vrot.slane %v995, 7
    %v1262 = vsel %vm1163, %v1261, %v994
    %v1263 = vrot.slane %v996, 6
    %v1264 = vsel %vm1166, %v1263, %v1262
    %v1265 = vrot.slane %v997, 5
    %v1266 = vsel %vm1169, %v1265, %v1264
    %v1267 = vrot.slane %v998, 4
    %v1268 = vsel %vm1172, %v1267, %v1266
    %v1269 = vrot.slane %v999, 3
    %v1270 = vsel %vm1175, %v1269, %v1268
    %v1271 = vrot.slane %v1000, 2
    %v1272 = vsel %vm1178, %v1271, %v1270
    %v1273 = vrot.slane %v1001, 1
    %v1274 = vsel %vm1181, %v1273, %v1272
    %v1284 = vrot.slane %v1011, 7
    %v1285 = vsel %vm1163, %v1284, %v1010
    %v1286 = vrot.slane %v1012, 6
    %v1287 = vsel %vm1166, %v1286, %v1285
    %v1288 = vrot.slane %v1013, 5
    %v1289 = vsel %vm1169, %v1288, %v1287
    %v1290 = vrot.slane %v1014, 4
    %v1291 = vsel %vm1172, %v1290, %v1289
    %v1292 = vrot.slane %v1015, 3
    %v1293 = vsel %vm1175, %v1292, %v1291
    %v1294 = vrot.slane %v1016, 2
    %v1295 = vsel %vm1178, %v1294, %v1293
    %v1296 = vrot.slane %v1017, 1
    %v1297 = vsel %vm1181, %v1296, %v1295
    %v1307 = vrot.slane %v1035, 7
    %v1308 = vsel %vm1163, %v1307, %v1034
    %v1309 = vrot.slane %v1036, 6
    %v1310 = vsel %vm1166, %v1309, %v1308
    %v1311 = vrot.slane %v1037, 5
    %v1312 = vsel %vm1169, %v1311, %v1310
    %v1313 = vrot.slane %v1038, 4
    %v1314 = vsel %vm1172, %v1313, %v1312
    %v1315 = vrot.slane %v1039, 3
    %v1316 = vsel %vm1175, %v1315, %v1314
    %v1317 = vrot.slane %v1040, 2
    %v1318 = vsel %vm1178, %v1317, %v1316
    %v1319 = vrot.slane %v1041, 1
    %v1320 = vsel %vm1181, %v1319, %v1318
    %v1330 = vrot.slane %v1075, 7
    %v1331 = vsel %vm1163, %v1330, %v1074
    %v1332 = vrot.slane %v1076, 6
    %v1333 = vsel %vm1166, %v1332, %v1331
    %v1334 = vrot.slane %v1077, 5
    %v1335 = vsel %vm1169, %v1334, %v1333
    %v1336 = vrot.slane %v1078, 4
    %v1337 = vsel %vm1172, %v1336, %v1335
    %v1338 = vrot.slane %v1079, 3
    %v1339 = vsel %vm1175, %v1338, %v1337
    %v1340 = vrot.slane %v1080, 2
    %v1341 = vsel %vm1178, %v1340, %v1339
    %v1342 = vrot.slane %v1081, 1
    %v1343 = vsel %vm1181, %v1342, %v1341
    %v1345 = vsel %vm473, %v1182, 0.0
    %v1346 = vsel %vm473, %v1205, 0.0
    %v1347 = vsel %vm473, %v1228, 0.0
    %v1348 = vsel %vm473, %v1251, 0.0
    %v1349 = vsel %vm473, %v1274, 0.0
    %v1350 = vsel %vm473, %v1297, 0.0
    %v1351 = vsel %vm473, %v1320, 0.0
    %v1352 = vsel %vm473, %v1343, 0.0
    %v1361 = vrot.slane %v1091, 7
    %v1362 = vsel %vm1163, %v1361, %v1090
    %v1363 = vrot.slane %v1092, 6
    %v1364 = vsel %vm1166, %v1363, %v1362
    %v1365 = vrot.slane %v1093, 5
    %v1366 = vsel %vm1169, %v1365, %v1364
    %v1367 = vrot.slane %v1094, 4
    %v1368 = vsel %vm1172, %v1367, %v1366
    %v1369 = vrot.slane %v1095, 3
    %v1370 = vsel %vm1175, %v1369, %v1368
    %v1371 = vrot.slane %v1096, 2
    %v1372 = vsel %vm1178, %v1371, %v1370
    %v1373 = vrot.slane %v1097, 1
    %v1374 = vsel %vm1181, %v1373, %v1372
    %v1384 = vrot.slane %v1107, 7
    %v1385 = vsel %vm1163, %v1384, %v1106
    %v1386 = vrot.slane %v1108, 6
    %v1387 = vsel %vm1166, %v1386, %v1385
    %v1388 = vrot.slane %v1109, 5
    %v1389 = vsel %vm1169, %v1388, %v1387
    %v1390 = vrot.slane %v1110, 4
    %v1391 = vsel %vm1172, %v1390, %v1389
    %v1392 = vrot.slane %v1111, 3
    %v1393 = vsel %vm1175, %v1392, %v1391
    %v1394 = vrot.slane %v1112, 2
    %v1395 = vsel %vm1178, %v1394, %v1393
    %v1396 = vrot.slane %v1113, 1
    %v1397 = vsel %vm1181, %v1396, %v1395
    %v1407 = vrot.slane %v1123, 7
    %v1408 = vsel %vm1163, %v1407, %v1122
    %v1409 = vrot.slane %v1124, 6
    %v1410 = vsel %vm1166, %v1409, %v1408
    %v1411 = vrot.slane %v1125, 5
    %v1412 = vsel %vm1169, %v1411, %v1410
    %v1413 = vrot.slane %v1126, 4
    %v1414 = vsel %vm1172, %v1413, %v1412
    %v1415 = vrot.slane %v1127, 3
    %v1416 = vsel %vm1175, %v1415, %v1414
    %v1417 = vrot.slane %v1128, 2
    %v1418 = vsel %vm1178, %v1417, %v1416
    %v1419 = vrot.slane %v1129, 1
    %v1420 = vsel %vm1181, %v1419, %v1418
    %v1430 = vrot.slane %v1147, 7
    %v1431 = vsel %vm1163, %v1430, %v1146
    %v1432 = vrot.slane %v1148, 6
    %v1433 = vsel %vm1166, %v1432, %v1431
    %v1434 = vrot.slane %v1149, 5
    %v1435 = vsel %vm1169, %v1434, %v1433
    %v1436 = vrot.slane %v1150, 4
    %v1437 = vsel %vm1172, %v1436, %v1435
    %v1438 = vrot.slane %v1151, 3
    %v1439 = vsel %vm1175, %v1438, %v1437
    %v1440 = vrot.slane %v1152, 2
    %v1441 = vsel %vm1178, %v1440, %v1439
    %v1442 = vrot.slane %v1153, 1
    %v1443 = vsel %vm1181, %v1442, %v1441
    %v1445 = vsel %vm473, %v1374, 0.0
    %v1446 = vsel %vm473, %v1397, 0.0
    %v1447 = vsel %vm473, %v1420, 0.0
    %v1448 = vsel %vm473, %v1443, 0.0
    %v1449 = vld [vmem:[#allocation2] sm:$0xff]
    %v1450 = vld [vmem:[#allocation2 + $0x8] sm:$0xff]
    %v1451 = vld [vmem:[#allocation2 + $0x10] sm:$0xff]
    %v1452 = vld [vmem:[#allocation2 + $0x18] sm:$0xff]
    %v1453 = vld [vmem:[#allocation2 + $0x20] sm:$0xff]
    %v1454 = vld [vmem:[#allocation2 + $0x28] sm:$0xff]
    %v1455 = vld [vmem:[#allocation2 + $0x30] sm:$0xff]
    %v1456 = vld [vmem:[#allocation2 + $0x38] sm:$0xff]
    %v1457 = vld [vmem:[#allocation2 + $0x40] sm:$0xff]
    %v1458 = vld [vmem:[#allocation2 + $0x48] sm:$0xff]
    %v1459 = vld [vmem:[#allocation2 + $0x50] sm:$0xff]
    %v1460 = vld [vmem:[#allocation2 + $0x58] sm:$0xff]
    %v1461 = vld [vmem:[#allocation2 + $0x60] sm:$0xff]
    %v1462 = vld [vmem:[#allocation2 + $0x68] sm:$0xff]
    %v1463 = vld [vmem:[#allocation2 + $0x70] sm:$0xff]
    %v1464 = vld [vmem:[#allocation2 + $0x78] sm:$0xff]
    %v1465 = vld [vmem:[#allocation2 + $0x80] sm:$0xff]
    %v1466 = vld [vmem:[#allocation2 + $0x88] sm:$0xff]
    %v1467 = vld [vmem:[#allocation2 + $0x90] sm:$0xff]
    %v1468 = vld [vmem:[#allocation2 + $0x98] sm:$0xff]
    %v1469 = vld [vmem:[#allocation2 + $0xa0] sm:$0xff]
    %v1470 = vld [vmem:[#allocation2 + $0xa8] sm:$0xff]
    %v1471 = vld [vmem:[#allocation2 + $0xb0] sm:$0xff]
    %v1472 = vld [vmem:[#allocation2 + $0xb8] sm:$0xff]
    %v1473 = vld [vmem:[#allocation2 + $0xc0] sm:$0xff]
    %v1474 = vld [vmem:[#allocation2 + $0xc8] sm:$0xff]
    %v1475 = vld [vmem:[#allocation2 + $0xd0] sm:$0xff]
    %v1476 = vld [vmem:[#allocation2 + $0xd8] sm:$0xff]
    %v1477 = vld [vmem:[#allocation2 + $0xe0] sm:$0xff]
    %v1478 = vld [vmem:[#allocation2 + $0xe8] sm:$0xff]
    %v1479 = vld [vmem:[#allocation2 + $0xf0] sm:$0xff]
    %v1480 = vld [vmem:[#allocation2 + $0xf8] sm:$0xff]
    %v1481 = vld [vmem:[#allocation2 + $0x100] sm:$0xff]
    %v1482 = vld [vmem:[#allocation2 + $0x108] sm:$0xff]
    %v1483 = vld [vmem:[#allocation2 + $0x110] sm:$0xff]
    %v1484 = vld [vmem:[#allocation2 + $0x118] sm:$0xff]
    %v1485 = vld [vmem:[#allocation2 + $0x120] sm:$0xff]
    %v1486 = vld [vmem:[#allocation2 + $0x128] sm:$0xff]
    %v1487 = vld [vmem:[#allocation2 + $0x130] sm:$0xff]
    %v1488 = vld [vmem:[#allocation2 + $0x138] sm:$0xff]
    %v1489 = vld [vmem:[#allocation2 + $0x140] sm:$0xff]
    %v1490 = vld [vmem:[#allocation2 + $0x148] sm:$0xff]
    %v1491 = vld [vmem:[#allocation2 + $0x150] sm:$0xff]
    %v1492 = vld [vmem:[#allocation2 + $0x158] sm:$0xff]
    %v1493 = vld [vmem:[#allocation2 + $0x160] sm:$0xff]
    %v1494 = vld [vmem:[#allocation2 + $0x168] sm:$0xff]
    %v1495 = vld [vmem:[#allocation2 + $0x170] sm:$0xff]
    %v1496 = vld [vmem:[#allocation2 + $0x178] sm:$0xff]
    %v1497 = vld [vmem:[#allocation2 + $0x180] sm:$0xff]
    %v1498 = vld [vmem:[#allocation2 + $0x188] sm:$0xff]
    %v1499 = vld [vmem:[#allocation2 + $0x190] sm:$0xff]
    %v1500 = vld [vmem:[#allocation2 + $0x198] sm:$0xff]
    %v1501 = vld [vmem:[#allocation2 + $0x1a0] sm:$0xff]
    %v1502 = vld [vmem:[#allocation2 + $0x1a8] sm:$0xff]
    %v1503 = vld [vmem:[#allocation2 + $0x1b0] sm:$0xff]
    %v1504 = vld [vmem:[#allocation2 + $0x1b8] sm:$0xff]
    %v1505 = vld [vmem:[#allocation2 + $0x1c0] sm:$0xff]
    %v1506 = vld [vmem:[#allocation2 + $0x1c8] sm:$0xff]
    %v1507 = vld [vmem:[#allocation2 + $0x1d0] sm:$0xff]
    %v1508 = vld [vmem:[#allocation2 + $0x1d8] sm:$0xff]
    %v1509 = vld [vmem:[#allocation2 + $0x1e0] sm:$0xff]
    %v1510 = vld [vmem:[#allocation2 + $0x1e8] sm:$0xff]
    %v1511 = vld [vmem:[#allocation2 + $0x1f0] sm:$0xff]
    %v1512 = vld [vmem:[#allocation2 + $0x1f8] sm:$0xff]
    %v1513 = vld [vmem:[#allocation2 + $0x200] sm:$0xff]
    %v1514 = vld [vmem:[#allocation2 + $0x208] sm:$0xff]
    %v1515 = vld [vmem:[#allocation2 + $0x210] sm:$0xff]
    %v1516 = vld [vmem:[#allocation2 + $0x218] sm:$0xff]
    %v1517 = vld [vmem:[#allocation2 + $0x220] sm:$0xff]
    %v1518 = vld [vmem:[#allocation2 + $0x228] sm:$0xff]
    %v1519 = vld [vmem:[#allocation2 + $0x230] sm:$0xff]
    %v1520 = vld [vmem:[#allocation2 + $0x238] sm:$0xff]
    %v1521 = vld [vmem:[#allocation2 + $0x240] sm:$0xff]
    %v1522 = vld [vmem:[#allocation2 + $0x248] sm:$0xff]
    %v1523 = vld [vmem:[#allocation2 + $0x250] sm:$0xff]
    %v1524 = vld [vmem:[#allocation2 + $0x258] sm:$0xff]
    %v1525 = vld [vmem:[#allocation2 + $0x260] sm:$0xff]
    %v1526 = vld [vmem:[#allocation2 + $0x268] sm:$0xff]
    %v1527 = vld [vmem:[#allocation2 + $0x270] sm:$0xff]
    %v1528 = vld [vmem:[#allocation2 + $0x278] sm:$0xff]
    %v1529 = vld [vmem:[#allocation2 + $0x280] sm:$0xff]
    %v1530 = vld [vmem:[#allocation2 + $0x288] sm:$0xff]
    %v1531 = vld [vmem:[#allocation2 + $0x290] sm:$0xff]
    %v1532 = vld [vmem:[#allocation2 + $0x298] sm:$0xff]
    %v1533 = vld [vmem:[#allocation2 + $0x2a0] sm:$0xff]
    %v1534 = vld [vmem:[#allocation2 + $0x2a8] sm:$0xff]
    %v1535 = vld [vmem:[#allocation2 + $0x2b0] sm:$0xff]
    %v1536 = vld [vmem:[#allocation2 + $0x2b8] sm:$0xff]
    %v1537 = vld [vmem:[#allocation2 + $0x2c0] sm:$0xff]
    %v1538 = vld [vmem:[#allocation2 + $0x2c8] sm:$0xff]
    %v1539 = vld [vmem:[#allocation2 + $0x2d0] sm:$0xff]
    %v1540 = vld [vmem:[#allocation2 + $0x2d8] sm:$0xff]
    %v1541 = vld [vmem:[#allocation2 + $0x2e0] sm:$0xff]
    %v1542 = vld [vmem:[#allocation2 + $0x2e8] sm:$0xff]
    %v1543 = vld [vmem:[#allocation2 + $0x2f0] sm:$0xff]
    %v1544 = vld [vmem:[#allocation2 + $0x2f8] sm:$0xff]
    %v1545 = vld [vmem:[#allocation2 + $0x300] sm:$0xff]
    %v1546 = vld [vmem:[#allocation2 + $0x308] sm:$0xff]
    %v1547 = vld [vmem:[#allocation2 + $0x310] sm:$0xff]
    %v1548 = vld [vmem:[#allocation2 + $0x318] sm:$0xff]
    %v1549 = vld [vmem:[#allocation2 + $0x320] sm:$0xff]
    %v1550 = vld [vmem:[#allocation2 + $0x328] sm:$0xff]
    %v1551 = vld [vmem:[#allocation2 + $0x330] sm:$0xff]
    %v1552 = vld [vmem:[#allocation2 + $0x338] sm:$0xff]
    %v1553 = vld [vmem:[#allocation2 + $0x340] sm:$0xff]
    %v1554 = vld [vmem:[#allocation2 + $0x348] sm:$0xff]
    %v1555 = vld [vmem:[#allocation2 + $0x350] sm:$0xff]
    %v1556 = vld [vmem:[#allocation2 + $0x358] sm:$0xff]
    %v1557 = vld [vmem:[#allocation2 + $0x360] sm:$0xff]
    %v1558 = vld [vmem:[#allocation2 + $0x368] sm:$0xff]
    %v1559 = vld [vmem:[#allocation2 + $0x370] sm:$0xff]
    %v1560 = vld [vmem:[#allocation2 + $0x378] sm:$0xff]
    %v1561 = vld [vmem:[#allocation2 + $0x380] sm:$0xff]
    %v1562 = vld [vmem:[#allocation2 + $0x388] sm:$0xff]
    %v1563 = vld [vmem:[#allocation2 + $0x390] sm:$0xff]
    %v1564 = vld [vmem:[#allocation2 + $0x398] sm:$0xff]
    %v1565 = vld [vmem:[#allocation2 + $0x3a0] sm:$0xff]
    %v1566 = vld [vmem:[#allocation2 + $0x3a8] sm:$0xff]
    %v1567 = vld [vmem:[#allocation2 + $0x3b0] sm:$0xff]
    %v1568 = vld [vmem:[#allocation2 + $0x3b8] sm:$0xff]
    %v1569 = vld [vmem:[#allocation2 + $0x3c0] sm:$0xff]
    %v1570 = vld [vmem:[#allocation2 + $0x3c8] sm:$0xff]
    %v1571 = vld [vmem:[#allocation2 + $0x3d0] sm:$0xff]
    %v1572 = vld [vmem:[#allocation2 + $0x3d8] sm:$0xff]
    %v1573 = vld [vmem:[#allocation2 + $0x3e0] sm:$0xff]
    %v1574 = vld [vmem:[#allocation2 + $0x3e8] sm:$0xff]
    %v1575 = vld [vmem:[#allocation2 + $0x3f0] sm:$0xff]
    %v1576 = vld [vmem:[#allocation2 + $0x3f8] sm:$0xff]
    %v1577 = vld [vmem:[#allocation2 + $0x400] sm:$0xff]
    %v1578 = vld [vmem:[#allocation2 + $0x408] sm:$0xff]
    %v1579 = vld [vmem:[#allocation2 + $0x410] sm:$0xff]
    %v1580 = vld [vmem:[#allocation2 + $0x418] sm:$0xff]
    %v1581 = vld [vmem:[#allocation2 + $0x420] sm:$0xff]
    %v1582 = vld [vmem:[#allocation2 + $0x428] sm:$0xff]
    %v1583 = vld [vmem:[#allocation2 + $0x430] sm:$0xff]
    %v1584 = vld [vmem:[#allocation2 + $0x438] sm:$0xff]
    %v1585 = vld [vmem:[#allocation2 + $0x440] sm:$0xff]
    %v1586 = vld [vmem:[#allocation2 + $0x448] sm:$0xff]
    %v1587 = vld [vmem:[#allocation2 + $0x450] sm:$0xff]
    %v1588 = vld [vmem:[#allocation2 + $0x458] sm:$0xff]
    %v1589 = vld [vmem:[#allocation2 + $0x460] sm:$0xff]
    %v1590 = vld [vmem:[#allocation2 + $0x468] sm:$0xff]
    %v1591 = vld [vmem:[#allocation2 + $0x470] sm:$0xff]
    %v1592 = vld [vmem:[#allocation2 + $0x478] sm:$0xff]
    %v1593 = vld [vmem:[#allocation2 + $0x480] sm:$0xff]
    %v1594 = vld [vmem:[#allocation2 + $0x488] sm:$0xff]
    %v1595 = vld [vmem:[#allocation2 + $0x490] sm:$0xff]
    %v1596 = vld [vmem:[#allocation2 + $0x498] sm:$0xff]
    %v1597 = vld [vmem:[#allocation2 + $0x4a0] sm:$0xff]
    %v1598 = vld [vmem:[#allocation2 + $0x4a8] sm:$0xff]
    %v1599 = vld [vmem:[#allocation2 + $0x4b0] sm:$0xff]
    %v1600 = vld [vmem:[#allocation2 + $0x4b8] sm:$0xff]
    %v1601 = vld [vmem:[#allocation2 + $0x4c0] sm:$0xff]
    %v1602 = vld [vmem:[#allocation2 + $0x4c8] sm:$0xff]
    %v1603 = vld [vmem:[#allocation2 + $0x4d0] sm:$0xff]
    %v1604 = vld [vmem:[#allocation2 + $0x4d8] sm:$0xff]
    %v1605 = vld [vmem:[#allocation2 + $0x4e0] sm:$0xff]
    %v1606 = vld [vmem:[#allocation2 + $0x4e8] sm:$0xff]
    %v1607 = vld [vmem:[#allocation2 + $0x4f0] sm:$0xff]
    %v1608 = vld [vmem:[#allocation2 + $0x4f8] sm:$0xff]
    %v1609 = vld [vmem:[#allocation2 + $0x500] sm:$0xff]
    %v1610 = vld [vmem:[#allocation2 + $0x508] sm:$0xff]
    %v1611 = vld [vmem:[#allocation2 + $0x510] sm:$0xff]
    %v1612 = vld [vmem:[#allocation2 + $0x518] sm:$0xff]
    %v1613 = vld [vmem:[#allocation2 + $0x520] sm:$0xff]
    %v1614 = vld [vmem:[#allocation2 + $0x528] sm:$0xff]
    %v1615 = vld [vmem:[#allocation2 + $0x530] sm:$0xff]
    %v1616 = vld [vmem:[#allocation2 + $0x538] sm:$0xff]
    %v1617 = vld [vmem:[#allocation2 + $0x540] sm:$0xff]
    %v1618 = vld [vmem:[#allocation2 + $0x548] sm:$0xff]
    %v1619 = vld [vmem:[#allocation2 + $0x550] sm:$0xff]
    %v1620 = vld [vmem:[#allocation2 + $0x558] sm:$0xff]
    %v1621 = vld [vmem:[#allocation2 + $0x560] sm:$0xff]
    %v1622 = vld [vmem:[#allocation2 + $0x568] sm:$0xff]
    %v1623 = vld [vmem:[#allocation2 + $0x570] sm:$0xff]
    %v1624 = vld [vmem:[#allocation2 + $0x578] sm:$0xff]
    %v1625 = vld [vmem:[#allocation2 + $0x580] sm:$0xff]
    %v1626 = vld [vmem:[#allocation2 + $0x588] sm:$0xff]
    %v1627 = vld [vmem:[#allocation2 + $0x590] sm:$0xff]
    %v1628 = vld [vmem:[#allocation2 + $0x598] sm:$0xff]
    %v1629 = vld [vmem:[#allocation2 + $0x5a0] sm:$0xff]
    %v1630 = vld [vmem:[#allocation2 + $0x5a8] sm:$0xff]
    %v1631 = vld [vmem:[#allocation2 + $0x5b0] sm:$0xff]
    %v1632 = vld [vmem:[#allocation2 + $0x5b8] sm:$0xff]
    %v1633 = vld [vmem:[#allocation2 + $0x5c0] sm:$0xff]
    %v1634 = vld [vmem:[#allocation2 + $0x5c8] sm:$0xff]
    %v1635 = vld [vmem:[#allocation2 + $0x5d0] sm:$0xff]
    %v1636 = vld [vmem:[#allocation2 + $0x5d8] sm:$0xff]
    %v1637 = vld [vmem:[#allocation2 + $0x5e0] sm:$0xff]
    %v1638 = vld [vmem:[#allocation2 + $0x5e8] sm:$0xff]
    %v1639 = vld [vmem:[#allocation2 + $0x5f0] sm:$0xff]
    %v1640 = vld [vmem:[#allocation2 + $0x5f8] sm:$0xff]
    %v1641 = vld [vmem:[%s3] sm:$0x1]
    %v1643 = vlaneseq
    %v1644 = vshrl.u32 %v1643, 7
    %v1645 = vsub.s32 0, %v1644
    %v1646 = vrot.slane %v1641, %v1645
    %1648 = vmatprep.subr.mxu0 0.0
    %1649 = vmatpush1.msra.mxu0 %v1449
    %1650 = vmatprep.subr.mxu0 0.0
    %1651 = vmatpush1.msra.mxu0 %v1450
    %1652 = vmatprep.subr.mxu0 0.0
    %1653 = vmatpush1.msra.mxu0 %v1451
    %1654 = vmatprep.subr.mxu0 0.0
    %1655 = vmatpush1.msra.mxu0 %v1452
    %1656 = vmatprep.subr.mxu0 0.0
    %1657 = vmatpush1.msra.mxu0 %v1453
    %1658 = vmatprep.subr.mxu0 0.0
    %1659 = vmatpush1.msra.mxu0 %v1454
    %1660 = vmatprep.subr.mxu0 0.0
    %1661 = vmatpush1.msra.mxu0 %v1455
    %1662 = vmatprep.subr.mxu0 0.0
    %1663 = vmatpush1.msra.mxu0 %v1456
    %1664 = vmatprep.subr.mxu0 0.0
    %1665 = vmatpush1.msra.mxu0 %v1457
    %1666 = vmatprep.subr.mxu0 0.0
    %1667 = vmatpush1.msra.mxu0 %v1458
    %1668 = vmatprep.subr.mxu0 0.0
    %1669 = vmatpush1.msra.mxu0 %v1459
    %1670 = vmatprep.subr.mxu0 0.0
    %1671 = vmatpush1.msra.mxu0 %v1460
    %1672 = vmatprep.subr.mxu0 0.0
    %1673 = vmatpush1.msra.mxu0 %v1461
    %1674 = vmatprep.subr.mxu0 0.0
    %1675 = vmatpush1.msra.mxu0 %v1462
    %1676 = vmatprep.subr.mxu0 0.0
    %1677 = vmatpush1.msra.mxu0 %v1463
    %1678 = vmatprep.subr.mxu0 0.0
    %1679 = vmatpush1.msra.mxu0 %v1464
    %1680 = vmatprep.subr.mxu0 0.0
    %1681 = vmatpush1.msra.mxu0 %v1465
    %1682 = vmatprep.subr.mxu0 0.0
    %1683 = vmatpush1.msra.mxu0 %v1466
    %1684 = vmatprep.subr.mxu0 0.0
    %1685 = vmatpush1.msra.mxu0 %v1467
    %1686 = vmatprep.subr.mxu0 0.0
    %1687 = vmatpush1.msra.mxu0 %v1468
    %1688 = vmatprep.subr.mxu0 0.0
    %1689 = vmatpush1.msra.mxu0 %v1469
    %1690 = vmatprep.subr.mxu0 0.0
    %1691 = vmatpush1.msra.mxu0 %v1470
    %1692 = vmatprep.subr.mxu0 0.0
    %1693 = vmatpush1.msra.mxu0 %v1471
    %1694 = vmatprep.subr.mxu0 0.0
    %1695 = vmatpush1.msra.mxu0 %v1472
    %1696 = vmatprep.subr.mxu0 0.0
    %1697 = vmatpush1.msra.mxu0 %v1473
    %1698 = vmatprep.subr.mxu0 0.0
    %1699 = vmatpush1.msra.mxu0 %v1474
    %1700 = vmatprep.subr.mxu0 0.0
    %1701 = vmatpush1.msra.mxu0 %v1475
    %1702 = vmatprep.subr.mxu0 0.0
    %1703 = vmatpush1.msra.mxu0 %v1476
    %1704 = vmatprep.subr.mxu0 0.0
    %1705 = vmatpush1.msra.mxu0 %v1477
    %1706 = vmatprep.subr.mxu0 0.0
    %1707 = vmatpush1.msra.mxu0 %v1478
    %1708 = vmatprep.subr.mxu0 0.0
    %1709 = vmatpush1.msra.mxu0 %v1479
    %1710 = vmatprep.subr.mxu0 0.0
    %1711 = vmatpush1.msra.mxu0 %v1480
    %1712 = vmatprep.mubr.f32.mxu0 %v1346
    %1713 = vmatmul.mubr.f32.gmra.mrb[0].mxu0 %v1345
    %v1714 = vpop.f32.mrb[0].mxu0
    %v1715 = vadd.f32 %v1646, %v1714
    %v1716 = vpop.f32.mrb[0].mxu0
    %1717 = vdwg.mxu0
    %1718 = vmatprep.subr.mxu0 0.0
    %1719 = vmatpush1.msra.mxu0 %v1481
    %1720 = vmatprep.subr.mxu0 0.0
    %1721 = vmatpush1.msra.mxu0 %v1482
    %1722 = vmatprep.subr.mxu0 0.0
    %1723 = vmatpush1.msra.mxu0 %v1483
    %1724 = vmatprep.subr.mxu0 0.0
    %1725 = vmatpush1.msra.mxu0 %v1484
    %1726 = vmatprep.subr.mxu0 0.0
    %1727 = vmatpush1.msra.mxu0 %v1485
    %1728 = vmatprep.subr.mxu0 0.0
    %1729 = vmatpush1.msra.mxu0 %v1486
    %1730 = vmatprep.subr.mxu0 0.0
    %1731 = vmatpush1.msra.mxu0 %v1487
    %1732 = vmatprep.subr.mxu0 0.0
    %1733 = vmatpush1.msra.mxu0 %v1488
    %1734 = vmatprep.subr.mxu0 0.0
    %1735 = vmatpush1.msra.mxu0 %v1489
    %1736 = vmatprep.subr.mxu0 0.0
    %1737 = vmatpush1.msra.mxu0 %v1490
    %1738 = vmatprep.subr.mxu0 0.0
    %1739 = vmatpush1.msra.mxu0 %v1491
    %1740 = vmatprep.subr.mxu0 0.0
    %1741 = vmatpush1.msra.mxu0 %v1492
    %1742 = vmatprep.subr.mxu0 0.0
    %1743 = vmatpush1.msra.mxu0 %v1493
    %1744 = vmatprep.subr.mxu0 0.0
    %1745 = vmatpush1.msra.mxu0 %v1494
    %1746 = vmatprep.subr.mxu0 0.0
    %1747 = vmatpush1.msra.mxu0 %v1495
    %1748 = vmatprep.subr.mxu0 0.0
    %1749 = vmatpush1.msra.mxu0 %v1496
    %1750 = vmatprep.subr.mxu0 0.0
    %1751 = vmatpush1.msra.mxu0 %v1497
    %1752 = vmatprep.subr.mxu0 0.0
    %1753 = vmatpush1.msra.mxu0 %v1498
    %1754 = vmatprep.subr.mxu0 0.0
    %1755 = vmatpush1.msra.mxu0 %v1499
    %1756 = vmatprep.subr.mxu0 0.0
    %1757 = vmatpush1.msra.mxu0 %v1500
    %1758 = vmatprep.subr.mxu0 0.0
    %1759 = vmatpush1.msra.mxu0 %v1501
    %1760 = vmatprep.subr.mxu0 0.0
    %1761 = vmatpush1.msra.mxu0 %v1502
    %1762 = vmatprep.subr.mxu0 0.0
    %1763 = vmatpush1.msra.mxu0 %v1503
    %1764 = vmatprep.subr.mxu0 0.0
    %1765 = vmatpush1.msra.mxu0 %v1504
    %1766 = vmatprep.subr.mxu0 0.0
    %1767 = vmatpush1.msra.mxu0 %v1505
    %1768 = vmatprep.subr.mxu0 0.0
    %1769 = vmatpush1.msra.mxu0 %v1506
    %1770 = vmatprep.subr.mxu0 0.0
    %1771 = vmatpush1.msra.mxu0 %v1507
    %1772 = vmatprep.subr.mxu0 0.0
    %1773 = vmatpush1.msra.mxu0 %v1508
    %1774 = vmatprep.subr.mxu0 0.0
    %1775 = vmatpush1.msra.mxu0 %v1509
    %1776 = vmatprep.subr.mxu0 0.0
    %1777 = vmatpush1.msra.mxu0 %v1510
    %1778 = vmatprep.subr.mxu0 0.0
    %1779 = vmatpush1.msra.mxu0 %v1511
    %1780 = vmatprep.subr.mxu0 0.0
    %1781 = vmatpush1.msra.mxu0 %v1512
    %1782 = vmatprep.mubr.f32.mxu0 %v1348
    %1783 = vmatmul.mubr.f32.gmra.mrb[0].mxu0 %v1347
    %v1784 = vpop.f32.mrb[0].mxu0
    %v1785 = vadd.f32 %v1715, %v1784
    %v1786 = vpop.f32.mrb[0].mxu0
    %1787 = vdwg.mxu0
    %1788 = vmatprep.subr.mxu0 0.0
    %1789 = vmatpush1.msra.mxu0 %v1513
    %1790 = vmatprep.subr.mxu0 0.0
    %1791 = vmatpush1.msra.mxu0 %v1514
    %1792 = vmatprep.subr.mxu0 0.0
    %1793 = vmatpush1.msra.mxu0 %v1515
    %1794 = vmatprep.subr.mxu0 0.0
    %1795 = vmatpush1.msra.mxu0 %v1516
    %1796 = vmatprep.subr.mxu0 0.0
    %1797 = vmatpush1.msra.mxu0 %v1517
    %1798 = vmatprep.subr.mxu0 0.0
    %1799 = vmatpush1.msra.mxu0 %v1518
    %1800 = vmatprep.subr.mxu0 0.0
    %1801 = vmatpush1.msra.mxu0 %v1519
    %1802 = vmatprep.subr.mxu0 0.0
    %1803 = vmatpush1.msra.mxu0 %v1520
    %1804 = vmatprep.subr.mxu0 0.0
    %1805 = vmatpush1.msra.mxu0 %v1521
    %1806 = vmatprep.subr.mxu0 0.0
    %1807 = vmatpush1.msra.mxu0 %v1522
    %1808 = vmatprep.subr.mxu0 0.0
    %1809 = vmatpush1.msra.mxu0 %v1523
    %1810 = vmatprep.subr.mxu0 0.0
    %1811 = vmatpush1.msra.mxu0 %v1524
    %1812 = vmatprep.subr.mxu0 0.0
    %1813 = vmatpush1.msra.mxu0 %v1525
    %1814 = vmatprep.subr.mxu0 0.0
    %1815 = vmatpush1.msra.mxu0 %v1526
    %1816 = vmatprep.subr.mxu0 0.0
    %1817 = vmatpush1.msra.mxu0 %v1527
    %1818 = vmatprep.subr.mxu0 0.0
    %1819 = vmatpush1.msra.mxu0 %v1528
    %1820 = vmatprep.subr.mxu0 0.0
    %1821 = vmatpush1.msra.mxu0 %v1529
    %1822 = vmatprep.subr.mxu0 0.0
    %1823 = vmatpush1.msra.mxu0 %v1530
    %1824 = vmatprep.subr.mxu0 0.0
    %1825 = vmatpush1.msra.mxu0 %v1531
    %1826 = vmatprep.subr.mxu0 0.0
    %1827 = vmatpush1.msra.mxu0 %v1532
    %1828 = vmatprep.subr.mxu0 0.0
    %1829 = vmatpush1.msra.mxu0 %v1533
    %1830 = vmatprep.subr.mxu0 0.0
    %1831 = vmatpush1.msra.mxu0 %v1534
    %1832 = vmatprep.subr.mxu0 0.0
    %1833 = vmatpush1.msra.mxu0 %v1535
    %1834 = vmatprep.subr.mxu0 0.0
    %1835 = vmatpush1.msra.mxu0 %v1536
    %1836 = vmatprep.subr.mxu0 0.0
    %1837 = vmatpush1.msra.mxu0 %v1537
    %1838 = vmatprep.subr.mxu0 0.0
    %1839 = vmatpush1.msra.mxu0 %v1538
    %1840 = vmatprep.subr.mxu0 0.0
    %1841 = vmatpush1.msra.mxu0 %v1539
    %1842 = vmatprep.subr.mxu0 0.0
    %1843 = vmatpush1.msra.mxu0 %v1540
    %1844 = vmatprep.subr.mxu0 0.0
    %1845 = vmatpush1.msra.mxu0 %v1541
    %1846 = vmatprep.subr.mxu0 0.0
    %1847 = vmatpush1.msra.mxu0 %v1542
    %1848 = vmatprep.subr.mxu0 0.0
    %1849 = vmatpush1.msra.mxu0 %v1543
    %1850 = vmatprep.subr.mxu0 0.0
    %1851 = vmatpush1.msra.mxu0 %v1544
    %1852 = vmatprep.mubr.f32.mxu0 %v1350
    %1853 = vmatmul.mubr.f32.gmra.mrb[0].mxu0 %v1349
    %v1854 = vpop.f32.mrb[0].mxu0
    %v1855 = vadd.f32 %v1785, %v1854
    %v1856 = vpop.f32.mrb[0].mxu0
    %1857 = vdwg.mxu0
    %1858 = vmatprep.subr.mxu0 0.0
    %1859 = vmatpush1.msra.mxu0 %v1545
    %1860 = vmatprep.subr.mxu0 0.0
    %1861 = vmatpush1.msra.mxu0 %v1546
    %1862 = vmatprep.subr.mxu0 0.0
    %1863 = vmatpush1.msra.mxu0 %v1547
    %1864 = vmatprep.subr.mxu0 0.0
    %1865 = vmatpush1.msra.mxu0 %v1548
    %1866 = vmatprep.subr.mxu0 0.0
    %1867 = vmatpush1.msra.mxu0 %v1549
    %1868 = vmatprep.subr.mxu0 0.0
    %1869 = vmatpush1.msra.mxu0 %v1550
    %1870 = vmatprep.subr.mxu0 0.0
    %1871 = vmatpush1.msra.mxu0 %v1551
    %1872 = vmatprep.subr.mxu0 0.0
    %1873 = vmatpush1.msra.mxu0 %v1552
    %1874 = vmatprep.subr.mxu0 0.0
    %1875 = vmatpush1.msra.mxu0 %v1553
    %1876 = vmatprep.subr.mxu0 0.0
    %1877 = vmatpush1.msra.mxu0 %v1554
    %1878 = vmatprep.subr.mxu0 0.0
    %1879 = vmatpush1.msra.mxu0 %v1555
    %1880 = vmatprep.subr.mxu0 0.0
    %1881 = vmatpush1.msra.mxu0 %v1556
    %1882 = vmatprep.subr.mxu0 0.0
    %1883 = vmatpush1.msra.mxu0 %v1557
    %1884 = vmatprep.subr.mxu0 0.0
    %1885 = vmatpush1.msra.mxu0 %v1558
    %1886 = vmatprep.subr.mxu0 0.0
    %1887 = vmatpush1.msra.mxu0 %v1559
    %1888 = vmatprep.subr.mxu0 0.0
    %1889 = vmatpush1.msra.mxu0 %v1560
    %1890 = vmatprep.subr.mxu0 0.0
    %1891 = vmatpush1.msra.mxu0 %v1561
    %1892 = vmatprep.subr.mxu0 0.0
    %1893 = vmatpush1.msra.mxu0 %v1562
    %1894 = vmatprep.subr.mxu0 0.0
    %1895 = vmatpush1.msra.mxu0 %v1563
    %1896 = vmatprep.subr.mxu0 0.0
    %1897 = vmatpush1.msra.mxu0 %v1564
    %1898 = vmatprep.subr.mxu0 0.0
    %1899 = vmatpush1.msra.mxu0 %v1565
    %1900 = vmatprep.subr.mxu0 0.0
    %1901 = vmatpush1.msra.mxu0 %v1566
    %1902 = vmatprep.subr.mxu0 0.0
    %1903 = vmatpush1.msra.mxu0 %v1567
    %1904 = vmatprep.subr.mxu0 0.0
    %1905 = vmatpush1.msra.mxu0 %v1568
    %1906 = vmatprep.subr.mxu0 0.0
    %1907 = vmatpush1.msra.mxu0 %v1569
    %1908 = vmatprep.subr.mxu0 0.0
    %1909 = vmatpush1.msra.mxu0 %v1570
    %1910 = vmatprep.subr.mxu0 0.0
    %1911 = vmatpush1.msra.mxu0 %v1571
    %1912 = vmatprep.subr.mxu0 0.0
    %1913 = vmatpush1.msra.mxu0 %v1572
    %1914 = vmatprep.subr.mxu0 0.0
    %1915 = vmatpush1.msra.mxu0 %v1573
    %1916 = vmatprep.subr.mxu0 0.0
    %1917 = vmatpush1.msra.mxu0 %v1574
    %1918 = vmatprep.subr.mxu0 0.0
    %1919 = vmatpush1.msra.mxu0 %v1575
    %1920 = vmatprep.subr.mxu0 0.0
    %1921 = vmatpush1.msra.mxu0 %v1576
    %1922 = vmatprep.mubr.f32.mxu0 %v1352
    %1923 = vmatmul.mubr.f32.gmra.mrb[0].mxu0 %v1351
    %v1924 = vpop.f32.mrb[0].mxu0
    %v1925 = vadd.f32 %v1855, %v1924
    %v1926 = vpop.f32.mrb[0].mxu0
    %1927 = vdwg.mxu0
    %1928 = vmatprep.subr.mxu0 0.0
    %1929 = vmatpush1.msra.mxu0 %v1577
    %1930 = vmatprep.subr.mxu0 0.0
    %1931 = vmatpush1.msra.mxu0 %v1578
    %1932 = vmatprep.subr.mxu0 0.0
    %1933 = vmatpush1.msra.mxu0 %v1579
    %1934 = vmatprep.subr.mxu0 0.0
    %1935 = vmatpush1.msra.mxu0 %v1580
    %1936 = vmatprep.subr.mxu0 0.0
    %1937 = vmatpush1.msra.mxu0 %v1581
    %1938 = vmatprep.subr.mxu0 0.0
    %1939 = vmatpush1.msra.mxu0 %v1582
    %1940 = vmatprep.subr.mxu0 0.0
    %1941 = vmatpush1.msra.mxu0 %v1583
    %1942 = vmatprep.subr.mxu0 0.0
    %1943 = vmatpush1.msra.mxu0 %v1584
    %1944 = vmatprep.subr.mxu0 0.0
    %1945 = vmatpush1.msra.mxu0 %v1585
    %1946 = vmatprep.subr.mxu0 0.0
    %1947 = vmatpush1.msra.mxu0 %v1586
    %1948 = vmatprep.subr.mxu0 0.0
    %1949 = vmatpush1.msra.mxu0 %v1587
    %1950 = vmatprep.subr.mxu0 0.0
    %1951 = vmatpush1.msra.mxu0 %v1588
    %1952 = vmatprep.subr.mxu0 0.0
    %1953 = vmatpush1.msra.mxu0 %v1589
    %1954 = vmatprep.subr.mxu0 0.0
    %1955 = vmatpush1.msra.mxu0 %v1590
    %1956 = vmatprep.subr.mxu0 0.0
    %1957 = vmatpush1.msra.mxu0 %v1591
    %1958 = vmatprep.subr.mxu0 0.0
    %1959 = vmatpush1.msra.mxu0 %v1592
    %1960 = vmatprep.subr.mxu0 0.0
    %1961 = vmatpush1.msra.mxu0 %v1593
    %1962 = vmatprep.subr.mxu0 0.0
    %1963 = vmatpush1.msra.mxu0 %v1594
    %1964 = vmatprep.subr.mxu0 0.0
    %1965 = vmatpush1.msra.mxu0 %v1595
    %1966 = vmatprep.subr.mxu0 0.0
    %1967 = vmatpush1.msra.mxu0 %v1596
    %1968 = vmatprep.subr.mxu0 0.0
    %1969 = vmatpush1.msra.mxu0 %v1597
    %1970 = vmatprep.subr.mxu0 0.0
    %1971 = vmatpush1.msra.mxu0 %v1598
    %1972 = vmatprep.subr.mxu0 0.0
    %1973 = vmatpush1.msra.mxu0 %v1599
    %1974 = vmatprep.subr.mxu0 0.0
    %1975 = vmatpush1.msra.mxu0 %v1600
    %1976 = vmatprep.subr.mxu0 0.0
    %1977 = vmatpush1.msra.mxu0 %v1601
    %1978 = vmatprep.subr.mxu0 0.0
    %1979 = vmatpush1.msra.mxu0 %v1602
    %1980 = vmatprep.subr.mxu0 0.0
    %1981 = vmatpush1.msra.mxu0 %v1603
    %1982 = vmatprep.subr.mxu0 0.0
    %1983 = vmatpush1.msra.mxu0 %v1604
    %1984 = vmatprep.subr.mxu0 0.0
    %1985 = vmatpush1.msra.mxu0 %v1605
    %1986 = vmatprep.subr.mxu0 0.0
    %1987 = vmatpush1.msra.mxu0 %v1606
    %1988 = vmatprep.subr.mxu0 0.0
    %1989 = vmatpush1.msra.mxu0 %v1607
    %1990 = vmatprep.subr.mxu0 0.0
    %1991 = vmatpush1.msra.mxu0 %v1608
    %1992 = vmatprep.mubr.f32.mxu0 %v1446
    %1993 = vmatmul.mubr.f32.gmra.mrb[0].mxu0 %v1445
    %v1994 = vpop.f32.mrb[0].mxu0
    %v1995 = vadd.f32 %v1925, %v1994
    %v1996 = vpop.f32.mrb[0].mxu0
    %1997 = vdwg.mxu0
    %1998 = vmatprep.subr.mxu0 0.0
    %1999 = vmatpush1.msra.mxu0 %v1609
    %2000 = vmatprep.subr.mxu0 0.0
    %2001 = vmatpush1.msra.mxu0 %v1610
    %2002 = vmatprep.subr.mxu0 0.0
    %2003 = vmatpush1.msra.mxu0 %v1611
    %2004 = vmatprep.subr.mxu0 0.0
    %2005 = vmatpush1.msra.mxu0 %v1612
    %2006 = vmatprep.subr.mxu0 0.0
    %2007 = vmatpush1.msra.mxu0 %v1613
    %2008 = vmatprep.subr.mxu0 0.0
    %2009 = vmatpush1.msra.mxu0 %v1614
    %2010 = vmatprep.subr.mxu0 0.0
    %2011 = vmatpush1.msra.mxu0 %v1615
    %2012 = vmatprep.subr.mxu0 0.0
    %2013 = vmatpush1.msra.mxu0 %v1616
    %2014 = vmatprep.subr.mxu0 0.0
    %2015 = vmatpush1.msra.mxu0 %v1617
    %2016 = vmatprep.subr.mxu0 0.0
    %2017 = vmatpush1.msra.mxu0 %v1618
    %2018 = vmatprep.subr.mxu0 0.0
    %2019 = vmatpush1.msra.mxu0 %v1619
    %2020 = vmatprep.subr.mxu0 0.0
    %2021 = vmatpush1.msra.mxu0 %v1620
    %2022 = vmatprep.subr.mxu0 0.0
    %2023 = vmatpush1.msra.mxu0 %v1621
    %2024 = vmatprep.subr.mxu0 0.0
    %2025 = vmatpush1.msra.mxu0 %v1622
    %2026 = vmatprep.subr.mxu0 0.0
    %2027 = vmatpush1.msra.mxu0 %v1623
    %2028 = vmatprep.subr.mxu0 0.0
    %2029 = vmatpush1.msra.mxu0 %v1624
    %2030 = vmatprep.subr.mxu0 0.0
    %2031 = vmatpush1.msra.mxu0 %v1625
    %2032 = vmatprep.subr.mxu0 0.0
    %2033 = vmatpush1.msra.mxu0 %v1626
    %2034 = vmatprep.subr.mxu0 0.0
    %2035 = vmatpush1.msra.mxu0 %v1627
    %2036 = vmatprep.subr.mxu0 0.0
    %2037 = vmatpush1.msra.mxu0 %v1628
    %2038 = vmatprep.subr.mxu0 0.0
    %2039 = vmatpush1.msra.mxu0 %v1629
    %2040 = vmatprep.subr.mxu0 0.0
    %2041 = vmatpush1.msra.mxu0 %v1630
    %2042 = vmatprep.subr.mxu0 0.0
    %2043 = vmatpush1.msra.mxu0 %v1631
    %2044 = vmatprep.subr.mxu0 0.0
    %2045 = vmatpush1.msra.mxu0 %v1632
    %2046 = vmatprep.subr.mxu0 0.0
    %2047 = vmatpush1.msra.mxu0 %v1633
    %2048 = vmatprep.subr.mxu0 0.0
    %2049 = vmatpush1.msra.mxu0 %v1634
    %2050 = vmatprep.subr.mxu0 0.0
    %2051 = vmatpush1.msra.mxu0 %v1635
    %2052 = vmatprep.subr.mxu0 0.0
    %2053 = vmatpush1.msra.mxu0 %v1636
    %2054 = vmatprep.subr.mxu0 0.0
    %2055 = vmatpush1.msra.mxu0 %v1637
    %2056 = vmatprep.subr.mxu0 0.0
    %2057 = vmatpush1.msra.mxu0 %v1638
    %2058 = vmatprep.subr.mxu0 0.0
    %2059 = vmatpush1.msra.mxu0 %v1639
    %2060 = vmatprep.subr.mxu0 0.0
    %2061 = vmatpush1.msra.mxu0 %v1640
    %2062 = vmatprep.mubr.f32.mxu0 %v1448
    %2063 = vmatmul.mubr.f32.gmra.mrb[0].mxu0 %v1447
    %v2064 = vpop.f32.mrb[0].mxu0
    %v2065 = vadd.f32 %v1995, %v2064
    %v2066 = vpop.f32.mrb[0].mxu0
    %2067 = vdwg.mxu0
    %v2068 = vmax.f32 %v2065, 0.0
    %v2069 = vld [vmem:[%s4] sm:$0xff]
    %v2070 = vld [vmem:[%s4 + $0x8] sm:$0xff]
    %v2071 = vld [vmem:[%s4 + $0x10] sm:$0xff]
    %v2072 = vld [vmem:[%s4 + $0x18] sm:$0xff]
    %v2073 = vld [vmem:[%s4 + $0x20] sm:$0xff]
    %v2074 = vld [vmem:[%s4 + $0x28] sm:$0xff]
    %v2075 = vld [vmem:[%s4 + $0x30] sm:$0xff]
    %v2076 = vld [vmem:[%s4 + $0x38] sm:$0xff]
    %v2077 = vld [vmem:[%s4 + $0x40] sm:$0xff]
    %v2078 = vld [vmem:[%s4 + $0x48] sm:$0xff]
    %v2079 = vld [vmem:[%s4 + $0x50] sm:$0xff]
    %v2080 = vld [vmem:[%s4 + $0x58] sm:$0xff]
    %v2081 = vld [vmem:[%s4 + $0x60] sm:$0xff]
    %v2082 = vld [vmem:[%s4 + $0x68] sm:$0xff]
    %v2083 = vld [vmem:[%s4 + $0x70] sm:$0xff]
    %v2084 = vld [vmem:[%s4 + $0x78] sm:$0xff]
    %v2085 = vld [vmem:[%s5] sm:$0x1]
    %v2087 = vlaneseq
    %v2088 = vshrl.u32 %v2087, 7
    %v2089 = vsub.s32 0, %v2088
    %v2090 = vrot.slane %v2085, %v2089
    %2092 = vmatprep.subr.mxu0 0.0
    %2093 = vmatpush1.msra.mxu0 %v2069
    %2094 = vmatprep.subr.mxu0 0.0
    %2095 = vmatpush1.msra.mxu0 %v2070
    %2096 = vmatprep.subr.mxu0 0.0
    %2097 = vmatpush1.msra.mxu0 %v2071
    %2098 = vmatprep.subr.mxu0 0.0
    %2099 = vmatpush1.msra.mxu0 %v2072
    %2100 = vmatprep.subr.mxu0 0.0
    %2101 = vmatpush1.msra.mxu0 %v2073
    %2102 = vmatprep.subr.mxu0 0.0
    %2103 = vmatpush1.msra.mxu0 %v2074
    %2104 = vmatprep.subr.mxu0 0.0
    %2105 = vmatpush1.msra.mxu0 %v2075
    %2106 = vmatprep.subr.mxu0 0.0
    %2107 = vmatpush1.msra.mxu0 %v2076
    %2108 = vmatprep.subr.mxu0 0.0
    %2109 = vmatpush1.msra.mxu0 %v2077
    %2110 = vmatprep.subr.mxu0 0.0
    %2111 = vmatpush1.msra.mxu0 %v2078
    %2112 = vmatprep.subr.mxu0 0.0
    %2113 = vmatpush1.msra.mxu0 %v2079
    %2114 = vmatprep.subr.mxu0 0.0
    %2115 = vmatpush1.msra.mxu0 %v2080
    %2116 = vmatprep.subr.mxu0 0.0
    %2117 = vmatpush1.msra.mxu0 %v2081
    %2118 = vmatprep.subr.mxu0 0.0
    %2119 = vmatpush1.msra.mxu0 %v2082
    %2120 = vmatprep.subr.mxu0 0.0
    %2121 = vmatpush1.msra.mxu0 %v2083
    %2122 = vmatprep.subr.mxu0 0.0
    %2123 = vmatpush1.msra.mxu0 %v2084
    %2124 = vmatprep.subr.mxu0 0.0
    %2125 = vmatpush1.msra.mxu0 0.0
    %2126 = vmatprep.subr.mxu0 0.0
    %2127 = vmatpush1.msra.mxu0 0.0
    %2128 = vmatprep.subr.mxu0 0.0
    %2129 = vmatpush1.msra.mxu0 0.0
    %2130 = vmatprep.subr.mxu0 0.0
    %2131 = vmatpush1.msra.mxu0 0.0
    %2132 = vmatprep.subr.mxu0 0.0
    %2133 = vmatpush1.msra.mxu0 0.0
    %2134 = vmatprep.subr.mxu0 0.0
    %2135 = vmatpush1.msra.mxu0 0.0
    %2136 = vmatprep.subr.mxu0 0.0
    %2137 = vmatpush1.msra.mxu0 0.0
    %2138 = vmatprep.subr.mxu0 0.0
    %2139 = vmatpush1.msra.mxu0 0.0
    %2140 = vmatprep.subr.mxu0 0.0
    %2141 = vmatpush1.msra.mxu0 0.0
    %2142 = vmatprep.subr.mxu0 0.0
    %2143 = vmatpush1.msra.mxu0 0.0
    %2144 = vmatprep.subr.mxu0 0.0
    %2145 = vmatpush1.msra.mxu0 0.0
    %2146 = vmatprep.subr.mxu0 0.0
    %2147 = vmatpush1.msra.mxu0 0.0
    %2148 = vmatprep.subr.mxu0 0.0
    %2149 = vmatpush1.msra.mxu0 0.0
    %2150 = vmatprep.subr.mxu0 0.0
    %2151 = vmatpush1.msra.mxu0 0.0
    %2152 = vmatprep.subr.mxu0 0.0
    %2153 = vmatpush1.msra.mxu0 0.0
    %2154 = vmatprep.subr.mxu0 0.0
    %2155 = vmatpush1.msra.mxu0 0.0
    %2156 = vmatprep.mubr.f32.mxu0 0.0
    %2157 = vmatmul.mubr.f32.gmra.mrb[0].mxu0 %v2068
    %v2158 = vpop.f32.mrb[0].mxu0
    %v2159 = vadd.f32 %v2090, %v2158
    %v2160 = vpop.f32.mrb[0].mxu0
    %2161 = vdwg.mxu0
    %2162 = vst [vmem:[#allocation5] sm:$0xff] %v2159
    // Predicated region
    $region30: #{tpu_custom_call.1} parent=1 // pred_check
      _
    $region31: #{tpu_custom_call.1} parent=1 // pred_check_branch
      %2164 = sbr.rel (0) target = $region33
    $region32: #{tpu_custom_call.1} parent=1 // pred_region
      %s2166 = ssub.s32 128, 128
      %2167 = vsyncadd [#allocation4], %s2166
      %s2169 = sshll.u32 [#allocation5], 4
      %s2170 = int_to_ptr.vmem [resolvable:$true] %s2169
      %2172 = dma.vmem_to_hbm [thread:$0]  %s2170, 128, %s6, [#allocation4]
    $region33: #{tpu_custom_call.1} parent=1 // pred_fallthru
      _
    // Predicated region
    $region34: #{tpu_custom_call.1} parent=1 // pred_check
      _
    $region35: #{tpu_custom_call.1} parent=1 // pred_check_branch
      %2174 = sbr.rel (0) target = $region37
    $region36: #{tpu_custom_call.1} parent=1 // pred_region
      %2175 = dma.done [#allocation4], 128
    $region37: #{tpu_custom_call.1} parent=1 // pred_fallthru
      _
    %2176 = vsyncpa [#allocation3], 1
    %2177 = vsyncpa [#allocation4], 1

</llo_original>
